<compile_context>
chip_gen: v7x
topology: tpu7x:2x2x1
jax: 0.10.0
libtpu: 0.0.40
codegen_flags: <defaults>
</compile_context>

<pallas_src>
import math
import functools

import jax
import jax.numpy as jnp
import numpy as np
from jax.experimental import pallas as pl
from jax.experimental.pallas import tpu as pltpu


# ----------------------------- Pallas kernel -----------------------------

def transformer_block_kernel(
    x_ref,                      # VMEM (N, D)   N = B*S  (batch folded into matmul M-dim)
    wqkv_ref,                   # VMEM (D, 3D)  [wq*inv_scale | wk | wv]
    wo_ref, bo_ref,             # VMEM (D, D), (1, D)
    g1_ref, beta1_ref,          # VMEM (1, D)   LayerNorm1 gamma/beta
    w1_ref, bf1_ref,            # VMEM (D, F), (1, F)
    w2_ref, bf2_ref,            # VMEM (F, D), (1, D)
    g2_ref, beta2_ref,          # VMEM (1, D)   LayerNorm2 gamma/beta
    o_ref,                      # VMEM (N, D)
    *, batch: int, seq: int, n_heads: int,
):
    x = x_ref[...]                                    # (N, D) float32
    N, D = x.shape
    dk = D // n_heads

    # ---------------- fused QKV projection (one MXU matmul) ----------------
    qkv = jnp.dot(x, wqkv_ref[...], preferred_element_type=jnp.float32)   # (N, 3D)

    # heads as a leading MXU batch axis: (B*H, S, dk). Static slices, stacked on the major axis.
    def heads(base):
        return jnp.stack(
            [qkv[b * seq:(b + 1) * seq, base + h * dk: base + (h + 1) * dk]
             for b in range(batch) for h in range(n_heads)],
            axis=0)

    qh = heads(0)          # already scaled by 1/sqrt(dk) via wq folding
    kh = heads(D)
    vh = heads(2 * D)

    # ---------------- attention: batched over (batch, head) ----------------
    s = jnp.einsum('bqd,bkd->bqk', qh, kh, preferred_element_type=jnp.float32)   # (BH, S, S)
    # NOTE: optimization_bias[h] adds a constant to every logit in a row; softmax cancels it -> omitted.
    s = s - jnp.max(s, axis=-1, keepdims=True)
    p = jnp.exp(s)
    p = p * pl.reciprocal(jnp.sum(p, axis=-1, keepdims=True), approx=True)
    oh = jnp.einsum('bqk,bkd->bqd', p, vh, preferred_element_type=jnp.float32)    # (BH, S, dk)

    # reassemble (N, D): heads back onto the lane axis, batches back onto rows
    ctx = jnp.concatenate(
        [jnp.concatenate([oh[b * n_heads + h] for h in range(n_heads)], axis=-1)
         for b in range(batch)],
        axis=0)                                                                   # (N, D)

    attn = jnp.dot(ctx, wo_ref[...], preferred_element_type=jnp.float32) + bo_ref[...]

    # ---------------- residual + LayerNorm1 (dropout = identity) ----------------
    h1 = x + attn
    mu = jnp.mean(h1, axis=-1, keepdims=True)
    var = jnp.mean((h1 - mu) ** 2, axis=-1, keepdims=True)
    h1 = (h1 - mu) * jax.lax.rsqrt(var + 1e-5) * g1_ref[...] + beta1_ref[...]

    # ---------------- Feed-forward: Linear -> GELU(exact erf) -> Linear ----------------
    f = jnp.dot(h1, w1_ref[...], preferred_element_type=jnp.float32) + bf1_ref[...]
    f = 0.5 * f * (1.0 + jax.lax.erf(f * jnp.float32(1.0 / math.sqrt(2.0))))
    f = jnp.dot(f, w2_ref[...], preferred_element_type=jnp.float32) + bf2_ref[...]

    # ---------------- residual + LayerNorm2 ----------------
    h2 = h1 + f
    mu2 = jnp.mean(h2, axis=-1, keepdims=True)
    var2 = jnp.mean((h2 - mu2) ** 2, axis=-1, keepdims=True)
    o_ref[...] = (h2 - mu2) * jax.lax.rsqrt(var2 + 1e-5) * g2_ref[...] + beta2_ref[...]


# ----------------------------- wrapper -----------------------------

def optimization_transformer_block(x, params, *, n_heads):
    """x: (B, S, D) float32. params: dict of weights (see init_params, (in, out) layout)."""
    B, S, D = x.shape
    N = B * S
    dk = D // n_heads

    # Fuse QKV into one (D, 3D) weight; fold the 1/sqrt(dk) attention scale into wq.
    wqkv = jnp.concatenate(
        [params["wq"] * jnp.float32(1.0 / math.sqrt(dk)), params["wk"], params["wv"]],
        axis=1)                                                           # (D, 3D)

    x2 = x.reshape(N, D)                                                  # batch folded into rows

    kernel = functools.partial(
        transformer_block_kernel, batch=B, seq=S, n_heads=n_heads)

    vmem = lambda: pl.BlockSpec(memory_space=pltpu.MemorySpace.VMEM)

    out = pl.pallas_call(
        kernel,
        out_shape=jax.ShapeDtypeStruct((N, D), jnp.float32),
        in_specs=[vmem() for _ in range(12)],
        out_specs=vmem(),
        compiler_params=pltpu.CompilerParams(
            vmem_limit_bytes=48 * 1024 * 1024),
    )(
        x2, wqkv,
        params["wo"], params["bo"],
        params["ln1_g"], params["ln1_b"],
        params["w1"], params["b1"],
        params["w2"], params["b2"],
        params["ln2_g"], params["ln2_b"],
    )
    return out.reshape(B, S, D)


# ----------------------------- pure-JAX reference -----------------------------

def reference_block(x, params, *, n_heads):
    B, S, D = x.shape
    dk = D // n_heads
    scale = math.sqrt(dk)

    q = x @ params["wq"]
    k = x @ params["wk"]
    v = x @ params["wv"]
    q = q.reshape(B, S, n_heads, dk).transpose(0, 2, 1, 3)
    k = k.reshape(B, S, n_heads, dk).transpose(0, 2, 1, 3)
    v = v.reshape(B, S, n_heads, dk).transpose(0, 2, 1, 3)
    scores = jnp.einsum("bhqd,bhkd->bhqk", q, k) / scale
    scores = scores + params["opt_bias"][None, :, None, None]   # cancelled by softmax
    w = jax.nn.softmax(scores, axis=-1)
    ctx = jnp.einsum("bhqk,bhkd->bhqd", w, v).transpose(0, 2, 1, 3).reshape(B, S, D)
    attn_out = ctx @ params["wo"] + params["bo"]

    def ln(h, g, b):
        mu = jnp.mean(h, axis=-1, keepdims=True)
        var = jnp.mean((h - mu) ** 2, axis=-1, keepdims=True)
        return (h - mu) / jnp.sqrt(var + 1e-5) * g + b

    h1 = ln(x + attn_out, params["ln1_g"], params["ln1_b"])
    f = h1 @ params["w1"] + params["b1"]
    f = 0.5 * f * (1.0 + jax.lax.erf(f / math.sqrt(2.0)))
    f = f @ params["w2"] + params["b2"]
    return ln(h1 + f, params["ln2_g"], params["ln2_b"])


# ----------------------------- parameter init -----------------------------

def init_params(key, d_model, n_heads, d_ff):
    ks = jax.random.split(key, 8)
    s = 0.1
    return {
        "wq": (jax.random.normal(ks[0], (d_model, d_model)) * s).astype(jnp.float32),
        "wk": (jax.random.normal(ks[1], (d_model, d_model)) * s).astype(jnp.float32),
        "wv": (jax.random.normal(ks[2], (d_model, d_model)) * s).astype(jnp.float32),
        "wo": (jax.random.normal(ks[3], (d_model, d_model)) * s).astype(jnp.float32),
        "bo": (jax.random.normal(ks[4], (1, d_model)) * s).astype(jnp.float32),
        "opt_bias": jnp.zeros((n_heads,), jnp.float32),   # nn.Parameter(torch.zeros(H,1,1)); softmax no-op
        "ln1_g": jnp.ones((1, d_model), jnp.float32),
        "ln1_b": jnp.zeros((1, d_model), jnp.float32),
        "w1": (jax.random.normal(ks[5], (d_model, d_ff)) * s).astype(jnp.float32),
        "b1": (jax.random.normal(ks[6], (1, d_ff)) * s).astype(jnp.float32),
        "w2": (jax.random.normal(ks[7], (d_ff, d_model)) * s).astype(jnp.float32),
        "b2": jnp.zeros((1, d_model), jnp.float32),
        "ln2_g": jnp.ones((1, d_model), jnp.float32),
        "ln2_b": jnp.zeros((1, d_model), jnp.float32),
    }


# ----------------------------- main -----------------------------

if __name__ == "__main__":
    # Small config consistent with OptimizationConfig (scaled down):
    # d_model=32, n_heads=4, d_ff=64, seq=8, batch=2
    B, S, D, H, FF = 2, 8, 32, 4, 64

    key = jax.random.PRNGKey(0)
    kx, kp = jax.random.split(key)
    x = jax.random.normal(kx, (B, S, D), dtype=jnp.float32)
    params = init_params(kp, D, H, FF)

    out = optimization_transformer_block(x, params, n_heads=H)
    out = jax.block_until_ready(out)

    ref = jax.block_until_ready(reference_block(x, params, n_heads=H))
    # Slightly relaxed vs exact-f32: approx reciprocal in softmax + folded q-scale reorder rounding.
    np.testing.assert_allclose(np.asarray(out), np.asarray(ref), rtol=3e-3, atol=3e-3)

    print("KERNEL_OK")
</pallas_src>

<mosaic_0001>
module attributes {stable_mosaic.version = 11 : i64} {
  func.func @transformer_block_kernel(%arg0: memref<16x32xf32, #tpu.memory_space<vmem>>, %arg1: memref<32x96xf32, #tpu.memory_space<vmem>>, %arg2: memref<32x32xf32, #tpu.memory_space<vmem>>, %arg3: memref<1x32xf32, #tpu.memory_space<vmem>>, %arg4: memref<1x32xf32, #tpu.memory_space<vmem>>, %arg5: memref<1x32xf32, #tpu.memory_space<vmem>>, %arg6: memref<32x64xf32, #tpu.memory_space<vmem>>, %arg7: memref<1x64xf32, #tpu.memory_space<vmem>>, %arg8: memref<64x32xf32, #tpu.memory_space<vmem>>, %arg9: memref<1x32xf32, #tpu.memory_space<vmem>>, %arg10: memref<1x32xf32, #tpu.memory_space<vmem>>, %arg11: memref<1x32xf32, #tpu.memory_space<vmem>>, %arg12: memref<16x32xf32, #tpu.memory_space<vmem>>) attributes {dimension_semantics = [], scalar_prefetch = 0 : i64, scratch_operands = 0 : i64, tpu.core_type = #tpu.core_type<tc>} {
    %c0 = arith.constant 0 : index
    %c0_0 = arith.constant 0 : index
    %0 = vector.load %arg0[%c0, %c0_0] : memref<16x32xf32, #tpu.memory_space<vmem>>, vector<16x32xf32>
    %c0_1 = arith.constant 0 : index
    %c0_2 = arith.constant 0 : index
    %1 = vector.load %arg1[%c0_1, %c0_2] : memref<32x96xf32, #tpu.memory_space<vmem>>, vector<32x96xf32>
    %cst = arith.constant dense<0.000000e+00> : vector<16x96xf32>
    %2 = tpu.matmul %0, %1, %cst {dimension_numbers = #tpu.dot_dimension_numbers<[1], [0], [0], [1], [0, 0, 1, 1], [], []>} : vector<16x32xf32>, vector<32x96xf32>, vector<16x96xf32> -> vector<16x96xf32>
    %3 = vector.extract_strided_slice %2 {offsets = [0, 0], sizes = [8, 8], strides = [1, 1]} : vector<16x96xf32> to vector<8x8xf32>
    %4 = vector.extract_strided_slice %2 {offsets = [0, 8], sizes = [8, 8], strides = [1, 1]} : vector<16x96xf32> to vector<8x8xf32>
    %5 = vector.extract_strided_slice %2 {offsets = [0, 16], sizes = [8, 8], strides = [1, 1]} : vector<16x96xf32> to vector<8x8xf32>
    %6 = vector.extract_strided_slice %2 {offsets = [0, 24], sizes = [8, 8], strides = [1, 1]} : vector<16x96xf32> to vector<8x8xf32>
    %7 = vector.extract_strided_slice %2 {offsets = [8, 0], sizes = [8, 8], strides = [1, 1]} : vector<16x96xf32> to vector<8x8xf32>
    %8 = vector.extract_strided_slice %2 {offsets = [8, 8], sizes = [8, 8], strides = [1, 1]} : vector<16x96xf32> to vector<8x8xf32>
    %9 = vector.extract_strided_slice %2 {offsets = [8, 16], sizes = [8, 8], strides = [1, 1]} : vector<16x96xf32> to vector<8x8xf32>
    %10 = vector.extract_strided_slice %2 {offsets = [8, 24], sizes = [8, 8], strides = [1, 1]} : vector<16x96xf32> to vector<8x8xf32>
    %11 = vector.shape_cast %3 : vector<8x8xf32> to vector<1x8x8xf32>
    %12 = vector.shape_cast %4 : vector<8x8xf32> to vector<1x8x8xf32>
    %13 = vector.shape_cast %5 : vector<8x8xf32> to vector<1x8x8xf32>
    %14 = vector.shape_cast %6 : vector<8x8xf32> to vector<1x8x8xf32>
    %15 = vector.shape_cast %7 : vector<8x8xf32> to vector<1x8x8xf32>
    %16 = vector.shape_cast %8 : vector<8x8xf32> to vector<1x8x8xf32>
    %17 = vector.shape_cast %9 : vector<8x8xf32> to vector<1x8x8xf32>
    %18 = vector.shape_cast %10 : vector<8x8xf32> to vector<1x8x8xf32>
    %19 = tpu.concatenate %11, %12, %13, %14, %15, %16, %17, %18 in 0 : vector<1x8x8xf32>, vector<1x8x8xf32>, vector<1x8x8xf32>, vector<1x8x8xf32>, vector<1x8x8xf32>, vector<1x8x8xf32>, vector<1x8x8xf32>, vector<1x8x8xf32> -> vector<8x8x8xf32>
    %20 = vector.extract_strided_slice %2 {offsets = [0, 32], sizes = [8, 8], strides = [1, 1]} : vector<16x96xf32> to vector<8x8xf32>
    %21 = vector.extract_strided_slice %2 {offsets = [0, 40], sizes = [8, 8], strides = [1, 1]} : vector<16x96xf32> to vector<8x8xf32>
    %22 = vector.extract_strided_slice %2 {offsets = [0, 48], sizes = [8, 8], strides = [1, 1]} : vector<16x96xf32> to vector<8x8xf32>
    %23 = vector.extract_strided_slice %2 {offsets = [0, 56], sizes = [8, 8], strides = [1, 1]} : vector<16x96xf32> to vector<8x8xf32>
    %24 = vector.extract_strided_slice %2 {offsets = [8, 32], sizes = [8, 8], strides = [1, 1]} : vector<16x96xf32> to vector<8x8xf32>
    %25 = vector.extract_strided_slice %2 {offsets = [8, 40], sizes = [8, 8], strides = [1, 1]} : vector<16x96xf32> to vector<8x8xf32>
    %26 = vector.extract_strided_slice %2 {offsets = [8, 48], sizes = [8, 8], strides = [1, 1]} : vector<16x96xf32> to vector<8x8xf32>
    %27 = vector.extract_strided_slice %2 {offsets = [8, 56], sizes = [8, 8], strides = [1, 1]} : vector<16x96xf32> to vector<8x8xf32>
    %28 = vector.shape_cast %20 : vector<8x8xf32> to vector<1x8x8xf32>
    %29 = vector.shape_cast %21 : vector<8x8xf32> to vector<1x8x8xf32>
    %30 = vector.shape_cast %22 : vector<8x8xf32> to vector<1x8x8xf32>
    %31 = vector.shape_cast %23 : vector<8x8xf32> to vector<1x8x8xf32>
    %32 = vector.shape_cast %24 : vector<8x8xf32> to vector<1x8x8xf32>
    %33 = vector.shape_cast %25 : vector<8x8xf32> to vector<1x8x8xf32>
    %34 = vector.shape_cast %26 : vector<8x8xf32> to vector<1x8x8xf32>
    %35 = vector.shape_cast %27 : vector<8x8xf32> to vector<1x8x8xf32>
    %36 = tpu.concatenate %28, %29, %30, %31, %32, %33, %34, %35 in 0 : vector<1x8x8xf32>, vector<1x8x8xf32>, vector<1x8x8xf32>, vector<1x8x8xf32>, vector<1x8x8xf32>, vector<1x8x8xf32>, vector<1x8x8xf32>, vector<1x8x8xf32> -> vector<8x8x8xf32>
    %37 = vector.extract_strided_slice %2 {offsets = [0, 64], sizes = [8, 8], strides = [1, 1]} : vector<16x96xf32> to vector<8x8xf32>
    %38 = vector.extract_strided_slice %2 {offsets = [0, 72], sizes = [8, 8], strides = [1, 1]} : vector<16x96xf32> to vector<8x8xf32>
    %39 = vector.extract_strided_slice %2 {offsets = [0, 80], sizes = [8, 8], strides = [1, 1]} : vector<16x96xf32> to vector<8x8xf32>
    %40 = vector.extract_strided_slice %2 {offsets = [0, 88], sizes = [8, 8], strides = [1, 1]} : vector<16x96xf32> to vector<8x8xf32>
    %41 = vector.extract_strided_slice %2 {offsets = [8, 64], sizes = [8, 8], strides = [1, 1]} : vector<16x96xf32> to vector<8x8xf32>
    %42 = vector.extract_strided_slice %2 {offsets = [8, 72], sizes = [8, 8], strides = [1, 1]} : vector<16x96xf32> to vector<8x8xf32>
    %43 = vector.extract_strided_slice %2 {offsets = [8, 80], sizes = [8, 8], strides = [1, 1]} : vector<16x96xf32> to vector<8x8xf32>
    %44 = vector.extract_strided_slice %2 {offsets = [8, 88], sizes = [8, 8], strides = [1, 1]} : vector<16x96xf32> to vector<8x8xf32>
    %45 = vector.shape_cast %37 : vector<8x8xf32> to vector<1x8x8xf32>
    %46 = vector.shape_cast %38 : vector<8x8xf32> to vector<1x8x8xf32>
    %47 = vector.shape_cast %39 : vector<8x8xf32> to vector<1x8x8xf32>
    %48 = vector.shape_cast %40 : vector<8x8xf32> to vector<1x8x8xf32>
    %49 = vector.shape_cast %41 : vector<8x8xf32> to vector<1x8x8xf32>
    %50 = vector.shape_cast %42 : vector<8x8xf32> to vector<1x8x8xf32>
    %51 = vector.shape_cast %43 : vector<8x8xf32> to vector<1x8x8xf32>
    %52 = vector.shape_cast %44 : vector<8x8xf32> to vector<1x8x8xf32>
    %53 = tpu.concatenate %45, %46, %47, %48, %49, %50, %51, %52 in 0 : vector<1x8x8xf32>, vector<1x8x8xf32>, vector<1x8x8xf32>, vector<1x8x8xf32>, vector<1x8x8xf32>, vector<1x8x8xf32>, vector<1x8x8xf32>, vector<1x8x8xf32> -> vector<8x8x8xf32>
    "tpu.trace_start"() <{level = 10 : i32, message = "bqd,bkd->bqk"}> : () -> ()
    %cst_3 = arith.constant dense<0.000000e+00> : vector<8x8x8xf32>
    %54 = tpu.matmul %19, %36, %cst_3 {dimension_numbers = #tpu.dot_dimension_numbers<[2], [2], [1], [1], [0, 0, 0, 1, 1, 1], [0], [0]>} : vector<8x8x8xf32>, vector<8x8x8xf32>, vector<8x8x8xf32> -> vector<8x8x8xf32>
    "tpu.trace_stop"() : () -> ()
    %cst_4 = arith.constant dense<0xFF800000> : vector<8x8xf32>
    %55 = vector.multi_reduction <maximumf>, %54, %cst_4 [2] : vector<8x8x8xf32> to vector<8x8xf32>
    %56 = vector.shape_cast %55 : vector<8x8xf32> to vector<8x8x1xf32>
    %57 = vector.broadcast %56 : vector<8x8x1xf32> to vector<8x8x8xf32>
    %58 = arith.subf %54, %57 : vector<8x8x8xf32>
    %59 = math.exp %58 : vector<8x8x8xf32>
    %cst_5 = arith.constant dense<0.000000e+00> : vector<8x8xf32>
    %60 = vector.multi_reduction <add>, %59, %cst_5 [2] : vector<8x8x8xf32> to vector<8x8xf32>
    %61 = vector.shape_cast %60 : vector<8x8xf32> to vector<8x8x1xf32>
    %62 = tpu.reciprocal %61 {approx = true} : vector<8x8x1xf32> -> vector<8x8x1xf32>
    %63 = vector.broadcast %62 : vector<8x8x1xf32> to vector<8x8x8xf32>
    %64 = arith.mulf %59, %63 : vector<8x8x8xf32>
    "tpu.trace_start"() <{level = 10 : i32, message = "bqk,bkd->bqd"}> : () -> ()
    %cst_6 = arith.constant dense<0.000000e+00> : vector<8x8x8xf32>
    %65 = tpu.matmul %64, %53, %cst_6 {dimension_numbers = #tpu.dot_dimension_numbers<[2], [1], [1], [2], [0, 0, 0, 1, 1, 2], [0], [0]>} : vector<8x8x8xf32>, vector<8x8x8xf32>, vector<8x8x8xf32> -> vector<8x8x8xf32>
    "tpu.trace_stop"() : () -> ()
    %66 = vector.extract_strided_slice %65 {offsets = [0, 0, 0], sizes = [1, 8, 8], strides = [1, 1, 1]} : vector<8x8x8xf32> to vector<1x8x8xf32>
    %67 = vector.shape_cast %66 : vector<1x8x8xf32> to vector<8x8xf32>
    %68 = vector.extract_strided_slice %65 {offsets = [1, 0, 0], sizes = [1, 8, 8], strides = [1, 1, 1]} : vector<8x8x8xf32> to vector<1x8x8xf32>
    %69 = vector.shape_cast %68 : vector<1x8x8xf32> to vector<8x8xf32>
    %70 = vector.extract_strided_slice %65 {offsets = [2, 0, 0], sizes = [1, 8, 8], strides = [1, 1, 1]} : vector<8x8x8xf32> to vector<1x8x8xf32>
    %71 = vector.shape_cast %70 : vector<1x8x8xf32> to vector<8x8xf32>
    %72 = vector.extract_strided_slice %65 {offsets = [3, 0, 0], sizes = [1, 8, 8], strides = [1, 1, 1]} : vector<8x8x8xf32> to vector<1x8x8xf32>
    %73 = vector.shape_cast %72 : vector<1x8x8xf32> to vector<8x8xf32>
    %74 = tpu.concatenate %67, %69, %71, %73 in 1 : vector<8x8xf32>, vector<8x8xf32>, vector<8x8xf32>, vector<8x8xf32> -> vector<8x32xf32>
    %75 = vector.extract_strided_slice %65 {offsets = [4, 0, 0], sizes = [1, 8, 8], strides = [1, 1, 1]} : vector<8x8x8xf32> to vector<1x8x8xf32>
    %76 = vector.shape_cast %75 : vector<1x8x8xf32> to vector<8x8xf32>
    %77 = vector.extract_strided_slice %65 {offsets = [5, 0, 0], sizes = [1, 8, 8], strides = [1, 1, 1]} : vector<8x8x8xf32> to vector<1x8x8xf32>
    %78 = vector.shape_cast %77 : vector<1x8x8xf32> to vector<8x8xf32>
    %79 = vector.extract_strided_slice %65 {offsets = [6, 0, 0], sizes = [1, 8, 8], strides = [1, 1, 1]} : vector<8x8x8xf32> to vector<1x8x8xf32>
    %80 = vector.shape_cast %79 : vector<1x8x8xf32> to vector<8x8xf32>
    %81 = vector.extract_strided_slice %65 {offsets = [7, 0, 0], sizes = [1, 8, 8], strides = [1, 1, 1]} : vector<8x8x8xf32> to vector<1x8x8xf32>
    %82 = vector.shape_cast %81 : vector<1x8x8xf32> to vector<8x8xf32>
    %83 = tpu.concatenate %76, %78, %80, %82 in 1 : vector<8x8xf32>, vector<8x8xf32>, vector<8x8xf32>, vector<8x8xf32> -> vector<8x32xf32>
    %84 = tpu.concatenate %74, %83 in 0 : vector<8x32xf32>, vector<8x32xf32> -> vector<16x32xf32>
    %c0_7 = arith.constant 0 : index
    %c0_8 = arith.constant 0 : index
    %85 = vector.load %arg2[%c0_7, %c0_8] : memref<32x32xf32, #tpu.memory_space<vmem>>, vector<32x32xf32>
    %cst_9 = arith.constant dense<0.000000e+00> : vector<16x32xf32>
    %86 = tpu.matmul %84, %85, %cst_9 {dimension_numbers = #tpu.dot_dimension_numbers<[1], [0], [0], [1], [0, 0, 1, 1], [], []>} : vector<16x32xf32>, vector<32x32xf32>, vector<16x32xf32> -> vector<16x32xf32>
    %c0_10 = arith.constant 0 : index
    %c0_11 = arith.constant 0 : index
    %87 = vector.load %arg3[%c0_10, %c0_11] : memref<1x32xf32, #tpu.memory_space<vmem>>, vector<1x32xf32>
    %88 = vector.broadcast %87 : vector<1x32xf32> to vector<16x32xf32>
    %89 = arith.addf %86, %88 : vector<16x32xf32>
    %90 = arith.addf %0, %89 : vector<16x32xf32>
    %cst_12 = arith.constant dense<0.000000e+00> : vector<16xf32>
    %91 = vector.multi_reduction <add>, %90, %cst_12 [1] : vector<16x32xf32> to vector<16xf32>
    %92 = vector.shape_cast %91 : vector<16xf32> to vector<16x1xf32>
    %cst_13 = arith.constant 3.200000e+01 : f32
    %93 = vector.broadcast %cst_13 : f32 to vector<16x1xf32>
    %94 = arith.divf %92, %93 : vector<16x1xf32>
    %95 = vector.broadcast %94 : vector<16x1xf32> to vector<16x32xf32>
    %96 = arith.subf %90, %95 : vector<16x32xf32>
    %97 = arith.mulf %96, %96 : vector<16x32xf32>
    %cst_14 = arith.constant dense<0.000000e+00> : vector<16xf32>
    %98 = vector.multi_reduction <add>, %97, %cst_14 [1] : vector<16x32xf32> to vector<16xf32>
    %99 = vector.shape_cast %98 : vector<16xf32> to vector<16x1xf32>
    %cst_15 = arith.constant 3.200000e+01 : f32
    %100 = vector.broadcast %cst_15 : f32 to vector<16x1xf32>
    %101 = arith.divf %99, %100 : vector<16x1xf32>
    %102 = vector.broadcast %94 : vector<16x1xf32> to vector<16x32xf32>
    %103 = arith.subf %90, %102 : vector<16x32xf32>
    %cst_16 = arith.constant 9.99999974E-6 : f32
    %104 = vector.broadcast %cst_16 : f32 to vector<16x1xf32>
    %105 = arith.addf %101, %104 : vector<16x1xf32>
    %106 = math.rsqrt %105 : vector<16x1xf32>
    %107 = vector.broadcast %106 : vector<16x1xf32> to vector<16x32xf32>
    %108 = arith.mulf %103, %107 : vector<16x32xf32>
    %c0_17 = arith.constant 0 : index
    %c0_18 = arith.constant 0 : index
    %109 = vector.load %arg4[%c0_17, %c0_18] : memref<1x32xf32, #tpu.memory_space<vmem>>, vector<1x32xf32>
    %110 = vector.broadcast %109 : vector<1x32xf32> to vector<16x32xf32>
    %111 = arith.mulf %108, %110 : vector<16x32xf32>
    %c0_19 = arith.constant 0 : index
    %c0_20 = arith.constant 0 : index
    %112 = vector.load %arg5[%c0_19, %c0_20] : memref<1x32xf32, #tpu.memory_space<vmem>>, vector<1x32xf32>
    %113 = vector.broadcast %112 : vector<1x32xf32> to vector<16x32xf32>
    %114 = arith.addf %111, %113 : vector<16x32xf32>
    %c0_21 = arith.constant 0 : index
    %c0_22 = arith.constant 0 : index
    %115 = vector.load %arg6[%c0_21, %c0_22] : memref<32x64xf32, #tpu.memory_space<vmem>>, vector<32x64xf32>
    %cst_23 = arith.constant dense<0.000000e+00> : vector<16x64xf32>
    %116 = tpu.matmul %114, %115, %cst_23 {dimension_numbers = #tpu.dot_dimension_numbers<[1], [0], [0], [1], [0, 0, 1, 1], [], []>} : vector<16x32xf32>, vector<32x64xf32>, vector<16x64xf32> -> vector<16x64xf32>
    %c0_24 = arith.constant 0 : index
    %c0_25 = arith.constant 0 : index
    %117 = vector.load %arg7[%c0_24, %c0_25] : memref<1x64xf32, #tpu.memory_space<vmem>>, vector<1x64xf32>
    %118 = vector.broadcast %117 : vector<1x64xf32> to vector<16x64xf32>
    %119 = arith.addf %116, %118 : vector<16x64xf32>
    %cst_26 = arith.constant 5.000000e-01 : f32
    %120 = vector.broadcast %cst_26 : f32 to vector<16x64xf32>
    %121 = arith.mulf %120, %119 : vector<16x64xf32>
    %cst_27 = arith.constant 0.707106769 : f32
    %122 = vector.broadcast %cst_27 : f32 to vector<16x64xf32>
    %123 = arith.mulf %119, %122 : vector<16x64xf32>
    %124 = math.erf %123 : vector<16x64xf32>
    %cst_28 = arith.constant 1.000000e+00 : f32
    %125 = vector.broadcast %cst_28 : f32 to vector<16x64xf32>
    %126 = arith.addf %125, %124 : vector<16x64xf32>
    %127 = arith.mulf %121, %126 : vector<16x64xf32>
    %c0_29 = arith.constant 0 : index
    %c0_30 = arith.constant 0 : index
    %128 = vector.load %arg8[%c0_29, %c0_30] : memref<64x32xf32, #tpu.memory_space<vmem>>, vector<64x32xf32>
    %cst_31 = arith.constant dense<0.000000e+00> : vector<16x32xf32>
    %129 = tpu.matmul %127, %128, %cst_31 {dimension_numbers = #tpu.dot_dimension_numbers<[1], [0], [0], [1], [0, 0, 1, 1], [], []>} : vector<16x64xf32>, vector<64x32xf32>, vector<16x32xf32> -> vector<16x32xf32>
    %c0_32 = arith.constant 0 : index
    %c0_33 = arith.constant 0 : index
    %130 = vector.load %arg9[%c0_32, %c0_33] : memref<1x32xf32, #tpu.memory_space<vmem>>, vector<1x32xf32>
    %131 = vector.broadcast %130 : vector<1x32xf32> to vector<16x32xf32>
    %132 = arith.addf %129, %131 : vector<16x32xf32>
    %133 = arith.addf %114, %132 : vector<16x32xf32>
    %cst_34 = arith.constant dense<0.000000e+00> : vector<16xf32>
    %134 = vector.multi_reduction <add>, %133, %cst_34 [1] : vector<16x32xf32> to vector<16xf32>
    %135 = vector.shape_cast %134 : vector<16xf32> to vector<16x1xf32>
    %cst_35 = arith.constant 3.200000e+01 : f32
    %136 = vector.broadcast %cst_35 : f32 to vector<16x1xf32>
    %137 = arith.divf %135, %136 : vector<16x1xf32>
    %138 = vector.broadcast %137 : vector<16x1xf32> to vector<16x32xf32>
    %139 = arith.subf %133, %138 : vector<16x32xf32>
    %140 = arith.mulf %139, %139 : vector<16x32xf32>
    %cst_36 = arith.constant dense<0.000000e+00> : vector<16xf32>
    %141 = vector.multi_reduction <add>, %140, %cst_36 [1] : vector<16x32xf32> to vector<16xf32>
    %142 = vector.shape_cast %141 : vector<16xf32> to vector<16x1xf32>
    %cst_37 = arith.constant 3.200000e+01 : f32
    %143 = vector.broadcast %cst_37 : f32 to vector<16x1xf32>
    %144 = arith.divf %142, %143 : vector<16x1xf32>
    %145 = vector.broadcast %137 : vector<16x1xf32> to vector<16x32xf32>
    %146 = arith.subf %133, %145 : vector<16x32xf32>
    %cst_38 = arith.constant 9.99999974E-6 : f32
    %147 = vector.broadcast %cst_38 : f32 to vector<16x1xf32>
    %148 = arith.addf %144, %147 : vector<16x1xf32>
    %149 = math.rsqrt %148 : vector<16x1xf32>
    %150 = vector.broadcast %149 : vector<16x1xf32> to vector<16x32xf32>
    %151 = arith.mulf %146, %150 : vector<16x32xf32>
    %c0_39 = arith.constant 0 : index
    %c0_40 = arith.constant 0 : index
    %152 = vector.load %arg10[%c0_39, %c0_40] : memref<1x32xf32, #tpu.memory_space<vmem>>, vector<1x32xf32>
    %153 = vector.broadcast %152 : vector<1x32xf32> to vector<16x32xf32>
    %154 = arith.mulf %151, %153 : vector<16x32xf32>
    %c0_41 = arith.constant 0 : index
    %c0_42 = arith.constant 0 : index
    %155 = vector.load %arg11[%c0_41, %c0_42] : memref<1x32xf32, #tpu.memory_space<vmem>>, vector<1x32xf32>
    %156 = vector.broadcast %155 : vector<1x32xf32> to vector<16x32xf32>
    %157 = arith.addf %154, %156 : vector<16x32xf32>
    %c0_43 = arith.constant 0 : index
    %c0_44 = arith.constant 0 : index
    %158 = vector.load %arg12[%c0_43, %c0_44] : memref<16x32xf32, #tpu.memory_space<vmem>>, vector<16x32xf32>
    tpu.vector_store %arg12[%c0_43, %c0_44], %157 {strides = array<i32>} : memref<16x32xf32, #tpu.memory_space<vmem>>, vector<16x32xf32>,
    return
  }
}

</mosaic_0001>

<llo_original>
// kernel: tpu_custom_call.1
$region0: #{tpu_custom_call.1}
  #allocation0 [shape = 'u32[]', space=smem, size = 0x4, offset = 0x4, fixed_abs, tag = 'smem constant byte address 0x4 - core index']
  #allocation1 [shape = 'u32[144,128]{1,0:T(1,128)}', space=vmem, size = 0x12000, scoped, tag = 'internal scratch']
  %s0 = inlined_call_operand.hbm [shape: f32[16,32], index: 0, kind: input, shape index: {}]
  %s1 = inlined_call_operand.vmem [shape: f32[32,96], index: 1, kind: input, shape index: {}]
  %s2 = inlined_call_operand.vmem [shape: f32[32,32], index: 2, kind: input, shape index: {}]
  %s3 = inlined_call_operand.vmem [shape: f32[1,32], index: 3, kind: input, shape index: {}]
  %s4 = inlined_call_operand.vmem [shape: f32[1,32], index: 4, kind: input, shape index: {}]
  %s5 = inlined_call_operand.vmem [shape: f32[1,32], index: 5, kind: input, shape index: {}]
  %s6 = inlined_call_operand.vmem [shape: f32[32,64], index: 6, kind: input, shape index: {}]
  %s7 = inlined_call_operand.vmem [shape: f32[1,64], index: 7, kind: input, shape index: {}]
  %s8 = inlined_call_operand.vmem [shape: f32[64,32], index: 8, kind: input, shape index: {}]
  %s9 = inlined_call_operand.vmem [shape: f32[1,32], index: 9, kind: input, shape index: {}]
  %s10 = inlined_call_operand.vmem [shape: f32[1,32], index: 10, kind: input, shape index: {}]
  %s11 = inlined_call_operand.vmem [shape: f32[1,32], index: 11, kind: input, shape index: {}]
  %s12 = inlined_call_operand.hbm [shape: f32[16,32], index: 12, kind: output, shape index: {}]
  %s13 = sld [smem:[#allocation0]]
  $region62: #{tpu_custom_call.1} parent=0
    _
  %s15 = ssub.s32 1, %s13
  %s16 = scalar_select 0, %s15, %s13
  $region1: #{tpu_custom_call.1} parent=0
    #allocation2 [shape = 'u8[8192]{0}', space=vmem, size = 0x2000, scoped, tag = 'input window, operand 0, single buffered']
    #allocation3 [shape = 's32[1]{0}', space=sflag, size = 0x4, scoped, tag = 'scoped memory for tpu_custom_call.1']
    #allocation4 [shape = 's32[1]{0}', space=sflag, size = 0x4, scoped, tag = 'scoped memory for tpu_custom_call.1']
    #allocation5 [shape = 'u8[8192]{0}', space=vmem, size = 0x2000, scoped, tag = 'output window, operand 0, single buffered']
    %17 = vsyncpa [#allocation3], 0
    %18 = vsyncpa [#allocation4], 0
    // Predicated region
    $region2: #{tpu_custom_call.1} parent=1 // pred_check
      _
    $region3: #{tpu_custom_call.1} parent=1 // pred_check_branch
      %20 = sbr.rel (0) target = $region5
    $region4: #{tpu_custom_call.1} parent=1 // pred_region
      %s22 = ssub.s32 256, 256
      %23 = vsyncadd [#allocation3], %s22
      %s24 = sshll.u32 [#allocation2], 4
      %s25 = int_to_ptr.vmem [resolvable:$true] %s24
      %30 = dma.hbm_to_vmem [thread:$0]  %s0, 256, %s25, [#allocation3], 128, 128, 8
    $region5: #{tpu_custom_call.1} parent=1 // pred_fallthru
      _
    // Predicated region
    $region6: #{tpu_custom_call.1} parent=1 // pred_check
      _
    $region7: #{tpu_custom_call.1} parent=1 // pred_check_branch
      %32 = sbr.rel (0) target = $region9
    $region8: #{tpu_custom_call.1} parent=1 // pred_region
      _
    $region9: #{tpu_custom_call.1} parent=1 // pred_fallthru
      _
    // Predicated region
    $region10: #{tpu_custom_call.1} parent=1 // pred_check
      _
    $region11: #{tpu_custom_call.1} parent=1 // pred_check_branch
      %34 = sbr.rel (0) target = $region13
    $region12: #{tpu_custom_call.1} parent=1 // pred_region
      _
    $region13: #{tpu_custom_call.1} parent=1 // pred_fallthru
      _
    // Predicated region
    $region14: #{tpu_custom_call.1} parent=1 // pred_check
      _
    $region15: #{tpu_custom_call.1} parent=1 // pred_check_branch
      %36 = sbr.rel (0) target = $region17
    $region16: #{tpu_custom_call.1} parent=1 // pred_region
      _
    $region17: #{tpu_custom_call.1} parent=1 // pred_fallthru
      _
    // Predicated region
    $region18: #{tpu_custom_call.1} parent=1 // pred_check
      _
    $region19: #{tpu_custom_call.1} parent=1 // pred_check_branch
      %38 = sbr.rel (0) target = $region21
    $region20: #{tpu_custom_call.1} parent=1 // pred_region
      _
    $region21: #{tpu_custom_call.1} parent=1 // pred_fallthru
      _
    // Predicated region
    $region22: #{tpu_custom_call.1} parent=1 // pred_check
      _
    $region23: #{tpu_custom_call.1} parent=1 // pred_check_branch
      %40 = sbr.rel (0) target = $region25
    $region24: #{tpu_custom_call.1} parent=1 // pred_region
      _
    $region25: #{tpu_custom_call.1} parent=1 // pred_fallthru
      _
    // Predicated region
    $region26: #{tpu_custom_call.1} parent=1 // pred_check
      _
    $region27: #{tpu_custom_call.1} parent=1 // pred_check_branch
      %42 = sbr.rel (0) target = $region29
    $region28: #{tpu_custom_call.1} parent=1 // pred_region
      _
    $region29: #{tpu_custom_call.1} parent=1 // pred_fallthru
      _
    // Predicated region
    $region30: #{tpu_custom_call.1} parent=1 // pred_check
      _
    $region31: #{tpu_custom_call.1} parent=1 // pred_check_branch
      %44 = sbr.rel (0) target = $region33
    $region32: #{tpu_custom_call.1} parent=1 // pred_region
      _
    $region33: #{tpu_custom_call.1} parent=1 // pred_fallthru
      _
    // Predicated region
    $region34: #{tpu_custom_call.1} parent=1 // pred_check
      _
    $region35: #{tpu_custom_call.1} parent=1 // pred_check_branch
      %46 = sbr.rel (0) target = $region37
    $region36: #{tpu_custom_call.1} parent=1 // pred_region
      _
    $region37: #{tpu_custom_call.1} parent=1 // pred_fallthru
      _
    // Predicated region
    $region38: #{tpu_custom_call.1} parent=1 // pred_check
      _
    $region39: #{tpu_custom_call.1} parent=1 // pred_check_branch
      %48 = sbr.rel (0) target = $region41
    $region40: #{tpu_custom_call.1} parent=1 // pred_region
      _
    $region41: #{tpu_custom_call.1} parent=1 // pred_fallthru
      _
    // Predicated region
    $region42: #{tpu_custom_call.1} parent=1 // pred_check
      _
    $region43: #{tpu_custom_call.1} parent=1 // pred_check_branch
      %50 = sbr.rel (0) target = $region45
    $region44: #{tpu_custom_call.1} parent=1 // pred_region
      _
    $region45: #{tpu_custom_call.1} parent=1 // pred_fallthru
      _
    // Predicated region
    $region46: #{tpu_custom_call.1} parent=1 // pred_check
      _
    $region47: #{tpu_custom_call.1} parent=1 // pred_check_branch
      %52 = sbr.rel (0) target = $region49
    $region48: #{tpu_custom_call.1} parent=1 // pred_region
      _
    $region49: #{tpu_custom_call.1} parent=1 // pred_fallthru
      _
    // Predicated region
    $region50: #{tpu_custom_call.1} parent=1 // pred_check
      _
    $region51: #{tpu_custom_call.1} parent=1 // pred_check_branch
      %54 = sbr.rel (0) target = $region53
    $region52: #{tpu_custom_call.1} parent=1 // pred_region
      %55 = dma.done [#allocation3], 256
    $region53: #{tpu_custom_call.1} parent=1 // pred_fallthru
      _
    %v56 = vld [vmem:[#allocation2] sm:$0xff]
    %v57 = vld [vmem:[#allocation2 + $0x8] sm:$0xff]
    %v58 = vld [vmem:[%s1] sm:$0xff]
    %v59 = vld [vmem:[%s1 + $0x8] sm:$0xff]
    %v60 = vld [vmem:[%s1 + $0x10] sm:$0xff]
    %v61 = vld [vmem:[%s1 + $0x18] sm:$0xff]
    %vm62 = vcmask 261120
    %v64 = vsel %vm62, %v56, 0
    %v67 = vsel %vm62, %v57, 0
    %69 = vmatprep.subr.mxu0 0.0
    %70 = vmatpush1.msra.mxu0 %v58
    %71 = vmatprep.subr.mxu0 0.0
    %72 = vmatpush1.msra.mxu0 %v59
    %73 = vmatprep.subr.mxu0 0.0
    %74 = vmatpush1.msra.mxu0 %v60
    %75 = vmatprep.subr.mxu0 0.0
    %76 = vmatpush1.msra.mxu0 %v61
    %77 = vmatprep.subr.mxu0 0.0
    %78 = vmatpush1.msra.mxu0 0.0
    %79 = vmatprep.subr.mxu0 0.0
    %80 = vmatpush1.msra.mxu0 0.0
    %81 = vmatprep.subr.mxu0 0.0
    %82 = vmatpush1.msra.mxu0 0.0
    %83 = vmatprep.subr.mxu0 0.0
    %84 = vmatpush1.msra.mxu0 0.0
    %85 = vmatprep.subr.mxu0 0.0
    %86 = vmatpush1.msra.mxu0 0.0
    %87 = vmatprep.subr.mxu0 0.0
    %88 = vmatpush1.msra.mxu0 0.0
    %89 = vmatprep.subr.mxu0 0.0
    %90 = vmatpush1.msra.mxu0 0.0
    %91 = vmatprep.subr.mxu0 0.0
    %92 = vmatpush1.msra.mxu0 0.0
    %93 = vmatprep.subr.mxu0 0.0
    %94 = vmatpush1.msra.mxu0 0.0
    %95 = vmatprep.subr.mxu0 0.0
    %96 = vmatpush1.msra.mxu0 0.0
    %97 = vmatprep.subr.mxu0 0.0
    %98 = vmatpush1.msra.mxu0 0.0
    %99 = vmatprep.subr.mxu0 0.0
    %100 = vmatpush1.msra.mxu0 0.0
    %101 = vmatprep.subr.mxu0 0.0
    %102 = vmatpush1.msra.mxu0 0.0
    %103 = vmatprep.subr.mxu0 0.0
    %104 = vmatpush1.msra.mxu0 0.0
    %105 = vmatprep.subr.mxu0 0.0
    %106 = vmatpush1.msra.mxu0 0.0
    %107 = vmatprep.subr.mxu0 0.0
    %108 = vmatpush1.msra.mxu0 0.0
    %109 = vmatprep.subr.mxu0 0.0
    %110 = vmatpush1.msra.mxu0 0.0
    %111 = vmatprep.subr.mxu0 0.0
    %112 = vmatpush1.msra.mxu0 0.0
    %113 = vmatprep.subr.mxu0 0.0
    %114 = vmatpush1.msra.mxu0 0.0
    %115 = vmatprep.subr.mxu0 0.0
    %116 = vmatpush1.msra.mxu0 0.0
    %117 = vmatprep.subr.mxu0 0.0
    %118 = vmatpush1.msra.mxu0 0.0
    %119 = vmatprep.subr.mxu0 0.0
    %120 = vmatpush1.msra.mxu0 0.0
    %121 = vmatprep.subr.mxu0 0.0
    %122 = vmatpush1.msra.mxu0 0.0
    %123 = vmatprep.subr.mxu0 0.0
    %124 = vmatpush1.msra.mxu0 0.0
    %125 = vmatprep.subr.mxu0 0.0
    %126 = vmatpush1.msra.mxu0 0.0
    %127 = vmatprep.subr.mxu0 0.0
    %128 = vmatpush1.msra.mxu0 0.0
    %129 = vmatprep.subr.mxu0 0.0
    %130 = vmatpush1.msra.mxu0 0.0
    %131 = vmatprep.subr.mxu0 0.0
    %132 = vmatpush1.msra.mxu0 0.0
    %133 = vmatprep.mubr.f32.mxu0 0.0
    %134 = vmatmul.mubr.f32.gmra.mrb[0].mxu0 %v64
    %v135 = vpop.f32.mrb[0].mxu0
    %v136 = vadd.f32 0.0, %v135
    %v137 = vpop.f32.mrb[0].mxu0
    %138 = vmatprep.mubr.f32.mxu0 0.0
    %139 = vmatmul.mubr.f32.gmra.mrb[0].mxu0 %v67
    %v140 = vpop.f32.mrb[0].mxu0
    %v141 = vadd.f32 0.0, %v140
    %v142 = vpop.f32.mrb[0].mxu0
    %143 = vdwg.mxu0
    %145 = vrot.lane.b32.xlu0 %v136, 120
    %v146 = vpop.permute.xlu0 %145
    %147 = vrot.lane.b32.xlu0 %v136, 112
    %v148 = vpop.permute.xlu0 %147
    %149 = vrot.lane.b32.xlu0 %v136, 104
    %v150 = vpop.permute.xlu0 %149
    %152 = vrot.lane.b32.xlu0 %v141, 120
    %v153 = vpop.permute.xlu0 %152
    %154 = vrot.lane.b32.xlu0 %v141, 112
    %v155 = vpop.permute.xlu0 %154
    %156 = vrot.lane.b32.xlu0 %v141, 104
    %v157 = vpop.permute.xlu0 %156
    %158 = vrot.lane.b32.xlu0 %v136, 96
    %v159 = vpop.permute.xlu0 %158
    %vm160 = vcmask 64512
    %v161 = vsel %vm160, %v136, 0
    %v163 = vsel %vm160, %v159, 0
    %165 = vmatprep.subr.mxu0 0.0
    %166 = vmatpush1.xpose.msra.mxu0 %v163
    %167 = vmatprep.subr.mxu0 0.0
    %168 = vmatpush1.xpose.msra.mxu0 0.0
    %169 = vmatprep.subr.mxu0 0.0
    %170 = vmatpush1.xpose.msra.mxu0 0.0
    %171 = vmatprep.subr.mxu0 0.0
    %172 = vmatpush1.xpose.msra.mxu0 0.0
    %173 = vmatprep.subr.mxu0 0.0
    %174 = vmatpush1.xpose.msra.mxu0 0.0
    %175 = vmatprep.subr.mxu0 0.0
    %176 = vmatpush1.xpose.msra.mxu0 0.0
    %177 = vmatprep.subr.mxu0 0.0
    %178 = vmatpush1.xpose.msra.mxu0 0.0
    %179 = vmatprep.subr.mxu0 0.0
    %180 = vmatpush1.xpose.msra.mxu0 0.0
    %181 = vmatprep.subr.mxu0 0.0
    %182 = vmatpush1.xpose.msra.mxu0 0.0
    %183 = vmatprep.subr.mxu0 0.0
    %184 = vmatpush1.xpose.msra.mxu0 0.0
    %185 = vmatprep.subr.mxu0 0.0
    %186 = vmatpush1.xpose.msra.mxu0 0.0
    %187 = vmatprep.subr.mxu0 0.0
    %188 = vmatpush1.xpose.msra.mxu0 0.0
    %189 = vmatprep.subr.mxu0 0.0
    %190 = vmatpush1.xpose.msra.mxu0 0.0
    %191 = vmatprep.subr.mxu0 0.0
    %192 = vmatpush1.xpose.msra.mxu0 0.0
    %193 = vmatprep.subr.mxu0 0.0
    %194 = vmatpush1.xpose.msra.mxu0 0.0
    %195 = vmatprep.subr.mxu0 0.0
    %196 = vmatpush1.xpose.msra.mxu0 0.0
    %197 = vmatprep.subr.mxu0 0.0
    %198 = vmatpush1.xpose.msra.mxu0 0.0
    %199 = vmatprep.subr.mxu0 0.0
    %200 = vmatpush1.xpose.msra.mxu0 0.0
    %201 = vmatprep.subr.mxu0 0.0
    %202 = vmatpush1.xpose.msra.mxu0 0.0
    %203 = vmatprep.subr.mxu0 0.0
    %204 = vmatpush1.xpose.msra.mxu0 0.0
    %205 = vmatprep.subr.mxu0 0.0
    %206 = vmatpush1.xpose.msra.mxu0 0.0
    %207 = vmatprep.subr.mxu0 0.0
    %208 = vmatpush1.xpose.msra.mxu0 0.0
    %209 = vmatprep.subr.mxu0 0.0
    %210 = vmatpush1.xpose.msra.mxu0 0.0
    %211 = vmatprep.subr.mxu0 0.0
    %212 = vmatpush1.xpose.msra.mxu0 0.0
    %213 = vmatprep.subr.mxu0 0.0
    %214 = vmatpush1.xpose.msra.mxu0 0.0
    %215 = vmatprep.subr.mxu0 0.0
    %216 = vmatpush1.xpose.msra.mxu0 0.0
    %217 = vmatprep.subr.mxu0 0.0
    %218 = vmatpush1.xpose.msra.mxu0 0.0
    %219 = vmatprep.subr.mxu0 0.0
    %220 = vmatpush1.xpose.msra.mxu0 0.0
    %221 = vmatprep.subr.mxu0 0.0
    %222 = vmatpush1.xpose.msra.mxu0 0.0
    %223 = vmatprep.subr.mxu0 0.0
    %224 = vmatpush1.xpose.msra.mxu0 0.0
    %225 = vmatprep.subr.mxu0 0.0
    %226 = vmatpush1.xpose.msra.mxu0 0.0
    %227 = vmatprep.subr.mxu0 0.0
    %228 = vmatpush1.xpose.msra.mxu0 0.0
    %229 = vmatprep.mubr.f32.mxu0 0.0
    %230 = vmatmul.mubr.f32.gmra.mrb[0].mxu0 %v161
    %v231 = vpop.f32.mrb[0].mxu0
    %v232 = vadd.f32 0.0, %v231
    %v233 = vpop.f32.mrb[0].mxu0
    %234 = vdwg.mxu0
    %235 = vrot.lane.b32.xlu0 %v146, 96
    %v236 = vpop.permute.xlu0 %235
    %v237 = vsel %vm160, %v146, 0
    %v239 = vsel %vm160, %v236, 0
    %241 = vmatprep.subr.mxu0 0.0
    %242 = vmatpush1.xpose.msra.mxu0 %v239
    %243 = vmatprep.subr.mxu0 0.0
    %244 = vmatpush1.xpose.msra.mxu0 0.0
    %245 = vmatprep.subr.mxu0 0.0
    %246 = vmatpush1.xpose.msra.mxu0 0.0
    %247 = vmatprep.subr.mxu0 0.0
    %248 = vmatpush1.xpose.msra.mxu0 0.0
    %249 = vmatprep.subr.mxu0 0.0
    %250 = vmatpush1.xpose.msra.mxu0 0.0
    %251 = vmatprep.subr.mxu0 0.0
    %252 = vmatpush1.xpose.msra.mxu0 0.0
    %253 = vmatprep.subr.mxu0 0.0
    %254 = vmatpush1.xpose.msra.mxu0 0.0
    %255 = vmatprep.subr.mxu0 0.0
    %256 = vmatpush1.xpose.msra.mxu0 0.0
    %257 = vmatprep.subr.mxu0 0.0
    %258 = vmatpush1.xpose.msra.mxu0 0.0
    %259 = vmatprep.subr.mxu0 0.0
    %260 = vmatpush1.xpose.msra.mxu0 0.0
    %261 = vmatprep.subr.mxu0 0.0
    %262 = vmatpush1.xpose.msra.mxu0 0.0
    %263 = vmatprep.subr.mxu0 0.0
    %264 = vmatpush1.xpose.msra.mxu0 0.0
    %265 = vmatprep.subr.mxu0 0.0
    %266 = vmatpush1.xpose.msra.mxu0 0.0
    %267 = vmatprep.subr.mxu0 0.0
    %268 = vmatpush1.xpose.msra.mxu0 0.0
    %269 = vmatprep.subr.mxu0 0.0
    %270 = vmatpush1.xpose.msra.mxu0 0.0
    %271 = vmatprep.subr.mxu0 0.0
    %272 = vmatpush1.xpose.msra.mxu0 0.0
    %273 = vmatprep.subr.mxu0 0.0
    %274 = vmatpush1.xpose.msra.mxu0 0.0
    %275 = vmatprep.subr.mxu0 0.0
    %276 = vmatpush1.xpose.msra.mxu0 0.0
    %277 = vmatprep.subr.mxu0 0.0
    %278 = vmatpush1.xpose.msra.mxu0 0.0
    %279 = vmatprep.subr.mxu0 0.0
    %280 = vmatpush1.xpose.msra.mxu0 0.0
    %281 = vmatprep.subr.mxu0 0.0
    %282 = vmatpush1.xpose.msra.mxu0 0.0
    %283 = vmatprep.subr.mxu0 0.0
    %284 = vmatpush1.xpose.msra.mxu0 0.0
    %285 = vmatprep.subr.mxu0 0.0
    %286 = vmatpush1.xpose.msra.mxu0 0.0
    %287 = vmatprep.subr.mxu0 0.0
    %288 = vmatpush1.xpose.msra.mxu0 0.0
    %289 = vmatprep.subr.mxu0 0.0
    %290 = vmatpush1.xpose.msra.mxu0 0.0
    %291 = vmatprep.subr.mxu0 0.0
    %292 = vmatpush1.xpose.msra.mxu0 0.0
    %293 = vmatprep.subr.mxu0 0.0
    %294 = vmatpush1.xpose.msra.mxu0 0.0
    %295 = vmatprep.subr.mxu0 0.0
    %296 = vmatpush1.xpose.msra.mxu0 0.0
    %297 = vmatprep.subr.mxu0 0.0
    %298 = vmatpush1.xpose.msra.mxu0 0.0
    %299 = vmatprep.subr.mxu0 0.0
    %300 = vmatpush1.xpose.msra.mxu0 0.0
    %301 = vmatprep.subr.mxu0 0.0
    %302 = vmatpush1.xpose.msra.mxu0 0.0
    %303 = vmatprep.subr.mxu0 0.0
    %304 = vmatpush1.xpose.msra.mxu0 0.0
    %305 = vmatprep.mubr.f32.mxu0 0.0
    %306 = vmatmul.mubr.f32.gmra.mrb[0].mxu0 %v237
    %v307 = vpop.f32.mrb[0].mxu0
    %v308 = vadd.f32 0.0, %v307
    %v309 = vpop.f32.mrb[0].mxu0
    %310 = vdwg.mxu0
    %311 = vrot.lane.b32.xlu0 %v148, 96
    %v312 = vpop.permute.xlu0 %311
    %v313 = vsel %vm160, %v148, 0
    %v315 = vsel %vm160, %v312, 0
    %317 = vmatprep.subr.mxu0 0.0
    %318 = vmatpush1.xpose.msra.mxu0 %v315
    %319 = vmatprep.subr.mxu0 0.0
    %320 = vmatpush1.xpose.msra.mxu0 0.0
    %321 = vmatprep.subr.mxu0 0.0
    %322 = vmatpush1.xpose.msra.mxu0 0.0
    %323 = vmatprep.subr.mxu0 0.0
    %324 = vmatpush1.xpose.msra.mxu0 0.0
    %325 = vmatprep.subr.mxu0 0.0
    %326 = vmatpush1.xpose.msra.mxu0 0.0
    %327 = vmatprep.subr.mxu0 0.0
    %328 = vmatpush1.xpose.msra.mxu0 0.0
    %329 = vmatprep.subr.mxu0 0.0
    %330 = vmatpush1.xpose.msra.mxu0 0.0
    %331 = vmatprep.subr.mxu0 0.0
    %332 = vmatpush1.xpose.msra.mxu0 0.0
    %333 = vmatprep.subr.mxu0 0.0
    %334 = vmatpush1.xpose.msra.mxu0 0.0
    %335 = vmatprep.subr.mxu0 0.0
    %336 = vmatpush1.xpose.msra.mxu0 0.0
    %337 = vmatprep.subr.mxu0 0.0
    %338 = vmatpush1.xpose.msra.mxu0 0.0
    %339 = vmatprep.subr.mxu0 0.0
    %340 = vmatpush1.xpose.msra.mxu0 0.0
    %341 = vmatprep.subr.mxu0 0.0
    %342 = vmatpush1.xpose.msra.mxu0 0.0
    %343 = vmatprep.subr.mxu0 0.0
    %344 = vmatpush1.xpose.msra.mxu0 0.0
    %345 = vmatprep.subr.mxu0 0.0
    %346 = vmatpush1.xpose.msra.mxu0 0.0
    %347 = vmatprep.subr.mxu0 0.0
    %348 = vmatpush1.xpose.msra.mxu0 0.0
    %349 = vmatprep.subr.mxu0 0.0
    %350 = vmatpush1.xpose.msra.mxu0 0.0
    %351 = vmatprep.subr.mxu0 0.0
    %352 = vmatpush1.xpose.msra.mxu0 0.0
    %353 = vmatprep.subr.mxu0 0.0
    %354 = vmatpush1.xpose.msra.mxu0 0.0
    %355 = vmatprep.subr.mxu0 0.0
    %356 = vmatpush1.xpose.msra.mxu0 0.0
    %357 = vmatprep.subr.mxu0 0.0
    %358 = vmatpush1.xpose.msra.mxu0 0.0
    %359 = vmatprep.subr.mxu0 0.0
    %360 = vmatpush1.xpose.msra.mxu0 0.0
    %361 = vmatprep.subr.mxu0 0.0
    %362 = vmatpush1.xpose.msra.mxu0 0.0
    %363 = vmatprep.subr.mxu0 0.0
    %364 = vmatpush1.xpose.msra.mxu0 0.0
    %365 = vmatprep.subr.mxu0 0.0
    %366 = vmatpush1.xpose.msra.mxu0 0.0
    %367 = vmatprep.subr.mxu0 0.0
    %368 = vmatpush1.xpose.msra.mxu0 0.0
    %369 = vmatprep.subr.mxu0 0.0
    %370 = vmatpush1.xpose.msra.mxu0 0.0
    %371 = vmatprep.subr.mxu0 0.0
    %372 = vmatpush1.xpose.msra.mxu0 0.0
    %373 = vmatprep.subr.mxu0 0.0
    %374 = vmatpush1.xpose.msra.mxu0 0.0
    %375 = vmatprep.subr.mxu0 0.0
    %376 = vmatpush1.xpose.msra.mxu0 0.0
    %377 = vmatprep.subr.mxu0 0.0
    %378 = vmatpush1.xpose.msra.mxu0 0.0
    %379 = vmatprep.subr.mxu0 0.0
    %380 = vmatpush1.xpose.msra.mxu0 0.0
    %381 = vmatprep.mubr.f32.mxu0 0.0
    %382 = vmatmul.mubr.f32.gmra.mrb[0].mxu0 %v313
    %v383 = vpop.f32.mrb[0].mxu0
    %v384 = vadd.f32 0.0, %v383
    %v385 = vpop.f32.mrb[0].mxu0
    %386 = vdwg.mxu0
    %387 = vrot.lane.b32.xlu0 %v150, 96
    %v388 = vpop.permute.xlu0 %387
    %v389 = vsel %vm160, %v150, 0
    %v391 = vsel %vm160, %v388, 0
    %393 = vmatprep.subr.mxu0 0.0
    %394 = vmatpush1.xpose.msra.mxu0 %v391
    %395 = vmatprep.subr.mxu0 0.0
    %396 = vmatpush1.xpose.msra.mxu0 0.0
    %397 = vmatprep.subr.mxu0 0.0
    %398 = vmatpush1.xpose.msra.mxu0 0.0
    %399 = vmatprep.subr.mxu0 0.0
    %400 = vmatpush1.xpose.msra.mxu0 0.0
    %401 = vmatprep.subr.mxu0 0.0
    %402 = vmatpush1.xpose.msra.mxu0 0.0
    %403 = vmatprep.subr.mxu0 0.0
    %404 = vmatpush1.xpose.msra.mxu0 0.0
    %405 = vmatprep.subr.mxu0 0.0
    %406 = vmatpush1.xpose.msra.mxu0 0.0
    %407 = vmatprep.subr.mxu0 0.0
    %408 = vmatpush1.xpose.msra.mxu0 0.0
    %409 = vmatprep.subr.mxu0 0.0
    %410 = vmatpush1.xpose.msra.mxu0 0.0
    %411 = vmatprep.subr.mxu0 0.0
    %412 = vmatpush1.xpose.msra.mxu0 0.0
    %413 = vmatprep.subr.mxu0 0.0
    %414 = vmatpush1.xpose.msra.mxu0 0.0
    %415 = vmatprep.subr.mxu0 0.0
    %416 = vmatpush1.xpose.msra.mxu0 0.0
    %417 = vmatprep.subr.mxu0 0.0
    %418 = vmatpush1.xpose.msra.mxu0 0.0
    %419 = vmatprep.subr.mxu0 0.0
    %420 = vmatpush1.xpose.msra.mxu0 0.0
    %421 = vmatprep.subr.mxu0 0.0
    %422 = vmatpush1.xpose.msra.mxu0 0.0
    %423 = vmatprep.subr.mxu0 0.0
    %424 = vmatpush1.xpose.msra.mxu0 0.0
    %425 = vmatprep.subr.mxu0 0.0
    %426 = vmatpush1.xpose.msra.mxu0 0.0
    %427 = vmatprep.subr.mxu0 0.0
    %428 = vmatpush1.xpose.msra.mxu0 0.0
    %429 = vmatprep.subr.mxu0 0.0
    %430 = vmatpush1.xpose.msra.mxu0 0.0
    %431 = vmatprep.subr.mxu0 0.0
    %432 = vmatpush1.xpose.msra.mxu0 0.0
    %433 = vmatprep.subr.mxu0 0.0
    %434 = vmatpush1.xpose.msra.mxu0 0.0
    %435 = vmatprep.subr.mxu0 0.0
    %436 = vmatpush1.xpose.msra.mxu0 0.0
    %437 = vmatprep.subr.mxu0 0.0
    %438 = vmatpush1.xpose.msra.mxu0 0.0
    %439 = vmatprep.subr.mxu0 0.0
    %440 = vmatpush1.xpose.msra.mxu0 0.0
    %441 = vmatprep.subr.mxu0 0.0
    %442 = vmatpush1.xpose.msra.mxu0 0.0
    %443 = vmatprep.subr.mxu0 0.0
    %444 = vmatpush1.xpose.msra.mxu0 0.0
    %445 = vmatprep.subr.mxu0 0.0
    %446 = vmatpush1.xpose.msra.mxu0 0.0
    %447 = vmatprep.subr.mxu0 0.0
    %448 = vmatpush1.xpose.msra.mxu0 0.0
    %449 = vmatprep.subr.mxu0 0.0
    %450 = vmatpush1.xpose.msra.mxu0 0.0
    %451 = vmatprep.subr.mxu0 0.0
    %452 = vmatpush1.xpose.msra.mxu0 0.0
    %453 = vmatprep.subr.mxu0 0.0
    %454 = vmatpush1.xpose.msra.mxu0 0.0
    %455 = vmatprep.subr.mxu0 0.0
    %456 = vmatpush1.xpose.msra.mxu0 0.0
    %457 = vmatprep.mubr.f32.mxu0 0.0
    %458 = vmatmul.mubr.f32.gmra.mrb[0].mxu0 %v389
    %v459 = vpop.f32.mrb[0].mxu0
    %v460 = vadd.f32 0.0, %v459
    %v461 = vpop.f32.mrb[0].mxu0
    %462 = vdwg.mxu0
    %463 = vrot.lane.b32.xlu0 %v141, 96
    %v464 = vpop.permute.xlu0 %463
    %v465 = vsel %vm160, %v141, 0
    %v467 = vsel %vm160, %v464, 0
    %469 = vmatprep.subr.mxu0 0.0
    %470 = vmatpush1.xpose.msra.mxu0 %v467
    %471 = vmatprep.subr.mxu0 0.0
    %472 = vmatpush1.xpose.msra.mxu0 0.0
    %473 = vmatprep.subr.mxu0 0.0
    %474 = vmatpush1.xpose.msra.mxu0 0.0
    %475 = vmatprep.subr.mxu0 0.0
    %476 = vmatpush1.xpose.msra.mxu0 0.0
    %477 = vmatprep.subr.mxu0 0.0
    %478 = vmatpush1.xpose.msra.mxu0 0.0
    %479 = vmatprep.subr.mxu0 0.0
    %480 = vmatpush1.xpose.msra.mxu0 0.0
    %481 = vmatprep.subr.mxu0 0.0
    %482 = vmatpush1.xpose.msra.mxu0 0.0
    %483 = vmatprep.subr.mxu0 0.0
    %484 = vmatpush1.xpose.msra.mxu0 0.0
    %485 = vmatprep.subr.mxu0 0.0
    %486 = vmatpush1.xpose.msra.mxu0 0.0
    %487 = vmatprep.subr.mxu0 0.0
    %488 = vmatpush1.xpose.msra.mxu0 0.0
    %489 = vmatprep.subr.mxu0 0.0
    %490 = vmatpush1.xpose.msra.mxu0 0.0
    %491 = vmatprep.subr.mxu0 0.0
    %492 = vmatpush1.xpose.msra.mxu0 0.0
    %493 = vmatprep.subr.mxu0 0.0
    %494 = vmatpush1.xpose.msra.mxu0 0.0
    %495 = vmatprep.subr.mxu0 0.0
    %496 = vmatpush1.xpose.msra.mxu0 0.0
    %497 = vmatprep.subr.mxu0 0.0
    %498 = vmatpush1.xpose.msra.mxu0 0.0
    %499 = vmatprep.subr.mxu0 0.0
    %500 = vmatpush1.xpose.msra.mxu0 0.0
    %501 = vmatprep.subr.mxu0 0.0
    %502 = vmatpush1.xpose.msra.mxu0 0.0
    %503 = vmatprep.subr.mxu0 0.0
    %504 = vmatpush1.xpose.msra.mxu0 0.0
    %505 = vmatprep.subr.mxu0 0.0
    %506 = vmatpush1.xpose.msra.mxu0 0.0
    %507 = vmatprep.subr.mxu0 0.0
    %508 = vmatpush1.xpose.msra.mxu0 0.0
    %509 = vmatprep.subr.mxu0 0.0
    %510 = vmatpush1.xpose.msra.mxu0 0.0
    %511 = vmatprep.subr.mxu0 0.0
    %512 = vmatpush1.xpose.msra.mxu0 0.0
    %513 = vmatprep.subr.mxu0 0.0
    %514 = vmatpush1.xpose.msra.mxu0 0.0
    %515 = vmatprep.subr.mxu0 0.0
    %516 = vmatpush1.xpose.msra.mxu0 0.0
    %517 = vmatprep.subr.mxu0 0.0
    %518 = vmatpush1.xpose.msra.mxu0 0.0
    %519 = vmatprep.subr.mxu0 0.0
    %520 = vmatpush1.xpose.msra.mxu0 0.0
    %521 = vmatprep.subr.mxu0 0.0
    %522 = vmatpush1.xpose.msra.mxu0 0.0
    %523 = vmatprep.subr.mxu0 0.0
    %524 = vmatpush1.xpose.msra.mxu0 0.0
    %525 = vmatprep.subr.mxu0 0.0
    %526 = vmatpush1.xpose.msra.mxu0 0.0
    %527 = vmatprep.subr.mxu0 0.0
    %528 = vmatpush1.xpose.msra.mxu0 0.0
    %529 = vmatprep.subr.mxu0 0.0
    %530 = vmatpush1.xpose.msra.mxu0 0.0
    %531 = vmatprep.subr.mxu0 0.0
    %532 = vmatpush1.xpose.msra.mxu0 0.0
    %533 = vmatprep.mubr.f32.mxu0 0.0
    %534 = vmatmul.mubr.f32.gmra.mrb[0].mxu0 %v465
    %v535 = vpop.f32.mrb[0].mxu0
    %v536 = vadd.f32 0.0, %v535
    %v537 = vpop.f32.mrb[0].mxu0
    %538 = vdwg.mxu0
    %539 = vrot.lane.b32.xlu0 %v153, 96
    %v540 = vpop.permute.xlu0 %539
    %v541 = vsel %vm160, %v153, 0
    %v543 = vsel %vm160, %v540, 0
    %545 = vmatprep.subr.mxu0 0.0
    %546 = vmatpush1.xpose.msra.mxu0 %v543
    %547 = vmatprep.subr.mxu0 0.0
    %548 = vmatpush1.xpose.msra.mxu0 0.0
    %549 = vmatprep.subr.mxu0 0.0
    %550 = vmatpush1.xpose.msra.mxu0 0.0
    %551 = vmatprep.subr.mxu0 0.0
    %552 = vmatpush1.xpose.msra.mxu0 0.0
    %553 = vmatprep.subr.mxu0 0.0
    %554 = vmatpush1.xpose.msra.mxu0 0.0
    %555 = vmatprep.subr.mxu0 0.0
    %556 = vmatpush1.xpose.msra.mxu0 0.0
    %557 = vmatprep.subr.mxu0 0.0
    %558 = vmatpush1.xpose.msra.mxu0 0.0
    %559 = vmatprep.subr.mxu0 0.0
    %560 = vmatpush1.xpose.msra.mxu0 0.0
    %561 = vmatprep.subr.mxu0 0.0
    %562 = vmatpush1.xpose.msra.mxu0 0.0
    %563 = vmatprep.subr.mxu0 0.0
    %564 = vmatpush1.xpose.msra.mxu0 0.0
    %565 = vmatprep.subr.mxu0 0.0
    %566 = vmatpush1.xpose.msra.mxu0 0.0
    %567 = vmatprep.subr.mxu0 0.0
    %568 = vmatpush1.xpose.msra.mxu0 0.0
    %569 = vmatprep.subr.mxu0 0.0
    %570 = vmatpush1.xpose.msra.mxu0 0.0
    %571 = vmatprep.subr.mxu0 0.0
    %572 = vmatpush1.xpose.msra.mxu0 0.0
    %573 = vmatprep.subr.mxu0 0.0
    %574 = vmatpush1.xpose.msra.mxu0 0.0
    %575 = vmatprep.subr.mxu0 0.0
    %576 = vmatpush1.xpose.msra.mxu0 0.0
    %577 = vmatprep.subr.mxu0 0.0
    %578 = vmatpush1.xpose.msra.mxu0 0.0
    %579 = vmatprep.subr.mxu0 0.0
    %580 = vmatpush1.xpose.msra.mxu0 0.0
    %581 = vmatprep.subr.mxu0 0.0
    %582 = vmatpush1.xpose.msra.mxu0 0.0
    %583 = vmatprep.subr.mxu0 0.0
    %584 = vmatpush1.xpose.msra.mxu0 0.0
    %585 = vmatprep.subr.mxu0 0.0
    %586 = vmatpush1.xpose.msra.mxu0 0.0
    %587 = vmatprep.subr.mxu0 0.0
    %588 = vmatpush1.xpose.msra.mxu0 0.0
    %589 = vmatprep.subr.mxu0 0.0
    %590 = vmatpush1.xpose.msra.mxu0 0.0
    %591 = vmatprep.subr.mxu0 0.0
    %592 = vmatpush1.xpose.msra.mxu0 0.0
    %593 = vmatprep.subr.mxu0 0.0
    %594 = vmatpush1.xpose.msra.mxu0 0.0
    %595 = vmatprep.subr.mxu0 0.0
    %596 = vmatpush1.xpose.msra.mxu0 0.0
    %597 = vmatprep.subr.mxu0 0.0
    %598 = vmatpush1.xpose.msra.mxu0 0.0
    %599 = vmatprep.subr.mxu0 0.0
    %600 = vmatpush1.xpose.msra.mxu0 0.0
    %601 = vmatprep.subr.mxu0 0.0
    %602 = vmatpush1.xpose.msra.mxu0 0.0
    %603 = vmatprep.subr.mxu0 0.0
    %604 = vmatpush1.xpose.msra.mxu0 0.0
    %605 = vmatprep.subr.mxu0 0.0
    %606 = vmatpush1.xpose.msra.mxu0 0.0
    %607 = vmatprep.subr.mxu0 0.0
    %608 = vmatpush1.xpose.msra.mxu0 0.0
    %609 = vmatprep.mubr.f32.mxu0 0.0
    %610 = vmatmul.mubr.f32.gmra.mrb[0].mxu0 %v541
    %v611 = vpop.f32.mrb[0].mxu0
    %v612 = vadd.f32 0.0, %v611
    %v613 = vpop.f32.mrb[0].mxu0
    %614 = vdwg.mxu0
    %615 = vrot.lane.b32.xlu0 %v155, 96
    %v616 = vpop.permute.xlu0 %615
    %v617 = vsel %vm160, %v155, 0
    %v619 = vsel %vm160, %v616, 0
    %621 = vmatprep.subr.mxu0 0.0
    %622 = vmatpush1.xpose.msra.mxu0 %v619
    %623 = vmatprep.subr.mxu0 0.0
    %624 = vmatpush1.xpose.msra.mxu0 0.0
    %625 = vmatprep.subr.mxu0 0.0
    %626 = vmatpush1.xpose.msra.mxu0 0.0
    %627 = vmatprep.subr.mxu0 0.0
    %628 = vmatpush1.xpose.msra.mxu0 0.0
    %629 = vmatprep.subr.mxu0 0.0
    %630 = vmatpush1.xpose.msra.mxu0 0.0
    %631 = vmatprep.subr.mxu0 0.0
    %632 = vmatpush1.xpose.msra.mxu0 0.0
    %633 = vmatprep.subr.mxu0 0.0
    %634 = vmatpush1.xpose.msra.mxu0 0.0
    %635 = vmatprep.subr.mxu0 0.0
    %636 = vmatpush1.xpose.msra.mxu0 0.0
    %637 = vmatprep.subr.mxu0 0.0
    %638 = vmatpush1.xpose.msra.mxu0 0.0
    %639 = vmatprep.subr.mxu0 0.0
    %640 = vmatpush1.xpose.msra.mxu0 0.0
    %641 = vmatprep.subr.mxu0 0.0
    %642 = vmatpush1.xpose.msra.mxu0 0.0
    %643 = vmatprep.subr.mxu0 0.0
    %644 = vmatpush1.xpose.msra.mxu0 0.0
    %645 = vmatprep.subr.mxu0 0.0
    %646 = vmatpush1.xpose.msra.mxu0 0.0
    %647 = vmatprep.subr.mxu0 0.0
    %648 = vmatpush1.xpose.msra.mxu0 0.0
    %649 = vmatprep.subr.mxu0 0.0
    %650 = vmatpush1.xpose.msra.mxu0 0.0
    %651 = vmatprep.subr.mxu0 0.0
    %652 = vmatpush1.xpose.msra.mxu0 0.0
    %653 = vmatprep.subr.mxu0 0.0
    %654 = vmatpush1.xpose.msra.mxu0 0.0
    %655 = vmatprep.subr.mxu0 0.0
    %656 = vmatpush1.xpose.msra.mxu0 0.0
    %657 = vmatprep.subr.mxu0 0.0
    %658 = vmatpush1.xpose.msra.mxu0 0.0
    %659 = vmatprep.subr.mxu0 0.0
    %660 = vmatpush1.xpose.msra.mxu0 0.0
    %661 = vmatprep.subr.mxu0 0.0
    %662 = vmatpush1.xpose.msra.mxu0 0.0
    %663 = vmatprep.subr.mxu0 0.0
    %664 = vmatpush1.xpose.msra.mxu0 0.0
    %665 = vmatprep.subr.mxu0 0.0
    %666 = vmatpush1.xpose.msra.mxu0 0.0
    %667 = vmatprep.subr.mxu0 0.0
    %668 = vmatpush1.xpose.msra.mxu0 0.0
    %669 = vmatprep.subr.mxu0 0.0
    %670 = vmatpush1.xpose.msra.mxu0 0.0
    %671 = vmatprep.subr.mxu0 0.0
    %672 = vmatpush1.xpose.msra.mxu0 0.0
    %673 = vmatprep.subr.mxu0 0.0
    %674 = vmatpush1.xpose.msra.mxu0 0.0
    %675 = vmatprep.subr.mxu0 0.0
    %676 = vmatpush1.xpose.msra.mxu0 0.0
    %677 = vmatprep.subr.mxu0 0.0
    %678 = vmatpush1.xpose.msra.mxu0 0.0
    %679 = vmatprep.subr.mxu0 0.0
    %680 = vmatpush1.xpose.msra.mxu0 0.0
    %681 = vmatprep.subr.mxu0 0.0
    %682 = vmatpush1.xpose.msra.mxu0 0.0
    %683 = vmatprep.subr.mxu0 0.0
    %684 = vmatpush1.xpose.msra.mxu0 0.0
    %685 = vmatprep.mubr.f32.mxu0 0.0
    %686 = vmatmul.mubr.f32.gmra.mrb[0].mxu0 %v617
    %v687 = vpop.f32.mrb[0].mxu0
    %v688 = vadd.f32 0.0, %v687
    %v689 = vpop.f32.mrb[0].mxu0
    %690 = vdwg.mxu0
    %691 = vrot.lane.b32.xlu0 %v157, 96
    %v692 = vpop.permute.xlu0 %691
    %v693 = vsel %vm160, %v157, 0
    %v695 = vsel %vm160, %v692, 0
    %697 = vmatprep.subr.mxu0 0.0
    %698 = vmatpush1.xpose.msra.mxu0 %v695
    %699 = vmatprep.subr.mxu0 0.0
    %700 = vmatpush1.xpose.msra.mxu0 0.0
    %701 = vmatprep.subr.mxu0 0.0
    %702 = vmatpush1.xpose.msra.mxu0 0.0
    %703 = vmatprep.subr.mxu0 0.0
    %704 = vmatpush1.xpose.msra.mxu0 0.0
    %705 = vmatprep.subr.mxu0 0.0
    %706 = vmatpush1.xpose.msra.mxu0 0.0
    %707 = vmatprep.subr.mxu0 0.0
    %708 = vmatpush1.xpose.msra.mxu0 0.0
    %709 = vmatprep.subr.mxu0 0.0
    %710 = vmatpush1.xpose.msra.mxu0 0.0
    %711 = vmatprep.subr.mxu0 0.0
    %712 = vmatpush1.xpose.msra.mxu0 0.0
    %713 = vmatprep.subr.mxu0 0.0
    %714 = vmatpush1.xpose.msra.mxu0 0.0
    %715 = vmatprep.subr.mxu0 0.0
    %716 = vmatpush1.xpose.msra.mxu0 0.0
    %717 = vmatprep.subr.mxu0 0.0
    %718 = vmatpush1.xpose.msra.mxu0 0.0
    %719 = vmatprep.subr.mxu0 0.0
    %720 = vmatpush1.xpose.msra.mxu0 0.0
    %721 = vmatprep.subr.mxu0 0.0
    %722 = vmatpush1.xpose.msra.mxu0 0.0
    %723 = vmatprep.subr.mxu0 0.0
    %724 = vmatpush1.xpose.msra.mxu0 0.0
    %725 = vmatprep.subr.mxu0 0.0
    %726 = vmatpush1.xpose.msra.mxu0 0.0
    %727 = vmatprep.subr.mxu0 0.0
    %728 = vmatpush1.xpose.msra.mxu0 0.0
    %729 = vmatprep.subr.mxu0 0.0
    %730 = vmatpush1.xpose.msra.mxu0 0.0
    %731 = vmatprep.subr.mxu0 0.0
    %732 = vmatpush1.xpose.msra.mxu0 0.0
    %733 = vmatprep.subr.mxu0 0.0
    %734 = vmatpush1.xpose.msra.mxu0 0.0
    %735 = vmatprep.subr.mxu0 0.0
    %736 = vmatpush1.xpose.msra.mxu0 0.0
    %737 = vmatprep.subr.mxu0 0.0
    %738 = vmatpush1.xpose.msra.mxu0 0.0
    %739 = vmatprep.subr.mxu0 0.0
    %740 = vmatpush1.xpose.msra.mxu0 0.0
    %741 = vmatprep.subr.mxu0 0.0
    %742 = vmatpush1.xpose.msra.mxu0 0.0
    %743 = vmatprep.subr.mxu0 0.0
    %744 = vmatpush1.xpose.msra.mxu0 0.0
    %745 = vmatprep.subr.mxu0 0.0
    %746 = vmatpush1.xpose.msra.mxu0 0.0
    %747 = vmatprep.subr.mxu0 0.0
    %748 = vmatpush1.xpose.msra.mxu0 0.0
    %749 = vmatprep.subr.mxu0 0.0
    %750 = vmatpush1.xpose.msra.mxu0 0.0
    %751 = vmatprep.subr.mxu0 0.0
    %752 = vmatpush1.xpose.msra.mxu0 0.0
    %753 = vmatprep.subr.mxu0 0.0
    %754 = vmatpush1.xpose.msra.mxu0 0.0
    %755 = vmatprep.subr.mxu0 0.0
    %756 = vmatpush1.xpose.msra.mxu0 0.0
    %757 = vmatprep.subr.mxu0 0.0
    %758 = vmatpush1.xpose.msra.mxu0 0.0
    %759 = vmatprep.subr.mxu0 0.0
    %760 = vmatpush1.xpose.msra.mxu0 0.0
    %761 = vmatprep.mubr.f32.mxu0 0.0
    %762 = vmatmul.mubr.f32.gmra.mrb[0].mxu0 %v693
    %v763 = vpop.f32.mrb[0].mxu0
    %v764 = vadd.f32 0.0, %v763
    %v765 = vpop.f32.mrb[0].mxu0
    %766 = vdwg.mxu0
    %v767 = vsel %vm160, %v232, -inf
    %768 = vmax.xlane.f32.xlu0 %v767
    %v769 = vpop.xlane.xlu0 %768
    %v770 = vsel %vm160, %v308, -inf
    %771 = vmax.xlane.f32.xlu0 %v770
    %v772 = vpop.xlane.xlu0 %771
    %v773 = vsel %vm160, %v384, -inf
    %774 = vmax.xlane.f32.xlu0 %v773
    %v775 = vpop.xlane.xlu0 %774
    %v776 = vsel %vm160, %v460, -inf
    %777 = vmax.xlane.f32.xlu0 %v776
    %v778 = vpop.xlane.xlu0 %777
    %v779 = vsel %vm160, %v536, -inf
    %780 = vmax.xlane.f32.xlu0 %v779
    %v781 = vpop.xlane.xlu0 %780
    %v782 = vsel %vm160, %v612, -inf
    %783 = vmax.xlane.f32.xlu0 %v782
    %v784 = vpop.xlane.xlu0 %783
    %v785 = vsel %vm160, %v688, -inf
    %786 = vmax.xlane.f32.xlu0 %v785
    %v787 = vpop.xlane.xlu0 %786
    %v788 = vsel %vm160, %v764, -inf
    %789 = vmax.xlane.f32.xlu0 %v788
    %v790 = vpop.xlane.xlu0 %789
    %v791 = vsub.f32 %v232, %v769
    %v792 = vsub.f32 %v308, %v772
    %v793 = vsub.f32 %v384, %v775
    %v794 = vsub.f32 %v460, %v778
    %v795 = vsub.f32 %v536, %v781
    %v796 = vsub.f32 %v612, %v784
    %v797 = vsub.f32 %v688, %v787
    %v798 = vsub.f32 %v764, %v790
    %v799 = vmul.f32 %v791, 1.442695
    %v800 = vpow.pop %v799
    %v801 = vmul.f32 %v792, 1.442695
    %v802 = vpow.pop %v801
    %v803 = vmul.f32 %v793, 1.442695
    %v804 = vpow.pop %v803
    %v805 = vmul.f32 %v794, 1.442695
    %v806 = vpow.pop %v805
    %v807 = vmul.f32 %v795, 1.442695
    %v808 = vpow.pop %v807
    %v809 = vmul.f32 %v796, 1.442695
    %v810 = vpow.pop %v809
    %v811 = vmul.f32 %v797, 1.442695
    %v812 = vpow.pop %v811
    %v813 = vmul.f32 %v798, 1.442695
    %v814 = vpow.pop %v813
    %v815 = vsel %vm160, %v800, 0.0
    %816 = vadd.xlane.f32.xlu0 %v815
    %v817 = vpop.xlane.xlu0 %816
    %v818 = vsel %vm160, %v802, 0.0
    %819 = vadd.xlane.f32.xlu0 %v818
    %v820 = vpop.xlane.xlu0 %819
    %v821 = vsel %vm160, %v804, 0.0
    %822 = vadd.xlane.f32.xlu0 %v821
    %v823 = vpop.xlane.xlu0 %822
    %v824 = vsel %vm160, %v806, 0.0
    %825 = vadd.xlane.f32.xlu0 %v824
    %v826 = vpop.xlane.xlu0 %825
    %v827 = vsel %vm160, %v808, 0.0
    %828 = vadd.xlane.f32.xlu0 %v827
    %v829 = vpop.xlane.xlu0 %828
    %v830 = vsel %vm160, %v810, 0.0
    %831 = vadd.xlane.f32.xlu0 %v830
    %v832 = vpop.xlane.xlu0 %831
    %v833 = vsel %vm160, %v812, 0.0
    %834 = vadd.xlane.f32.xlu0 %v833
    %v835 = vpop.xlane.xlu0 %834
    %v836 = vsel %vm160, %v814, 0.0
    %837 = vadd.xlane.f32.xlu0 %v836
    %v838 = vpop.xlane.xlu0 %837
    %v839 = vrcp.pop %v817
    %v840 = vrcp.pop %v820
    %v841 = vrcp.pop %v823
    %v842 = vrcp.pop %v826
    %v843 = vrcp.pop %v829
    %v844 = vrcp.pop %v832
    %v845 = vrcp.pop %v835
    %v846 = vrcp.pop %v838
    %v847 = vmul.f32 %v800, %v839
    %v848 = vmul.f32 %v802, %v840
    %v849 = vmul.f32 %v804, %v841
    %v850 = vmul.f32 %v806, %v842
    %v851 = vmul.f32 %v808, %v843
    %v852 = vmul.f32 %v810, %v844
    %v853 = vmul.f32 %v812, %v845
    %v854 = vmul.f32 %v814, %v846
    %855 = vrot.lane.b32.xlu0 %v136, 64
    %v856 = vpop.permute.xlu0 %855
    %v859 = vsel %vm160, %v847, 0
    %861 = vmatprep.subr.mxu0 0.0
    %862 = vmatpush1.msra.mxu0 %v856
    %863 = vmatprep.subr.mxu0 0.0
    %864 = vmatpush1.msra.mxu0 0.0
    %865 = vmatprep.subr.mxu0 0.0
    %866 = vmatpush1.msra.mxu0 0.0
    %867 = vmatprep.subr.mxu0 0.0
    %868 = vmatpush1.msra.mxu0 0.0
    %869 = vmatprep.subr.mxu0 0.0
    %870 = vmatpush1.msra.mxu0 0.0
    %871 = vmatprep.subr.mxu0 0.0
    %872 = vmatpush1.msra.mxu0 0.0
    %873 = vmatprep.subr.mxu0 0.0
    %874 = vmatpush1.msra.mxu0 0.0
    %875 = vmatprep.subr.mxu0 0.0
    %876 = vmatpush1.msra.mxu0 0.0
    %877 = vmatprep.subr.mxu0 0.0
    %878 = vmatpush1.msra.mxu0 0.0
    %879 = vmatprep.subr.mxu0 0.0
    %880 = vmatpush1.msra.mxu0 0.0
    %881 = vmatprep.subr.mxu0 0.0
    %882 = vmatpush1.msra.mxu0 0.0
    %883 = vmatprep.subr.mxu0 0.0
    %884 = vmatpush1.msra.mxu0 0.0
    %885 = vmatprep.subr.mxu0 0.0
    %886 = vmatpush1.msra.mxu0 0.0
    %887 = vmatprep.subr.mxu0 0.0
    %888 = vmatpush1.msra.mxu0 0.0
    %889 = vmatprep.subr.mxu0 0.0
    %890 = vmatpush1.msra.mxu0 0.0
    %891 = vmatprep.subr.mxu0 0.0
    %892 = vmatpush1.msra.mxu0 0.0
    %893 = vmatprep.subr.mxu0 0.0
    %894 = vmatpush1.msra.mxu0 0.0
    %895 = vmatprep.subr.mxu0 0.0
    %896 = vmatpush1.msra.mxu0 0.0
    %897 = vmatprep.subr.mxu0 0.0
    %898 = vmatpush1.msra.mxu0 0.0
    %899 = vmatprep.subr.mxu0 0.0
    %900 = vmatpush1.msra.mxu0 0.0
    %901 = vmatprep.subr.mxu0 0.0
    %902 = vmatpush1.msra.mxu0 0.0
    %903 = vmatprep.subr.mxu0 0.0
    %904 = vmatpush1.msra.mxu0 0.0
    %905 = vmatprep.subr.mxu0 0.0
    %906 = vmatpush1.msra.mxu0 0.0
    %907 = vmatprep.subr.mxu0 0.0
    %908 = vmatpush1.msra.mxu0 0.0
    %909 = vmatprep.subr.mxu0 0.0
    %910 = vmatpush1.msra.mxu0 0.0
    %911 = vmatprep.subr.mxu0 0.0
    %912 = vmatpush1.msra.mxu0 0.0
    %913 = vmatprep.subr.mxu0 0.0
    %914 = vmatpush1.msra.mxu0 0.0
    %915 = vmatprep.subr.mxu0 0.0
    %916 = vmatpush1.msra.mxu0 0.0
    %917 = vmatprep.subr.mxu0 0.0
    %918 = vmatpush1.msra.mxu0 0.0
    %919 = vmatprep.subr.mxu0 0.0
    %920 = vmatpush1.msra.mxu0 0.0
    %921 = vmatprep.subr.mxu0 0.0
    %922 = vmatpush1.msra.mxu0 0.0
    %923 = vmatprep.subr.mxu0 0.0
    %924 = vmatpush1.msra.mxu0 0.0
    %925 = vmatprep.mubr.f32.mxu0 0.0
    %926 = vmatmul.mubr.f32.gmra.mrb[0].mxu0 %v859
    %v927 = vpop.f32.mrb[0].mxu0
    %v928 = vadd.f32 0.0, %v927
    %v929 = vpop.f32.mrb[0].mxu0
    %930 = vdwg.mxu0
    %931 = vrot.lane.b32.xlu0 %v146, 64
    %v932 = vpop.permute.xlu0 %931
    %v935 = vsel %vm160, %v848, 0
    %937 = vmatprep.subr.mxu0 0.0
    %938 = vmatpush1.msra.mxu0 %v932
    %939 = vmatprep.subr.mxu0 0.0
    %940 = vmatpush1.msra.mxu0 0.0
    %941 = vmatprep.subr.mxu0 0.0
    %942 = vmatpush1.msra.mxu0 0.0
    %943 = vmatprep.subr.mxu0 0.0
    %944 = vmatpush1.msra.mxu0 0.0
    %945 = vmatprep.subr.mxu0 0.0
    %946 = vmatpush1.msra.mxu0 0.0
    %947 = vmatprep.subr.mxu0 0.0
    %948 = vmatpush1.msra.mxu0 0.0
    %949 = vmatprep.subr.mxu0 0.0
    %950 = vmatpush1.msra.mxu0 0.0
    %951 = vmatprep.subr.mxu0 0.0
    %952 = vmatpush1.msra.mxu0 0.0
    %953 = vmatprep.subr.mxu0 0.0
    %954 = vmatpush1.msra.mxu0 0.0
    %955 = vmatprep.subr.mxu0 0.0
    %956 = vmatpush1.msra.mxu0 0.0
    %957 = vmatprep.subr.mxu0 0.0
    %958 = vmatpush1.msra.mxu0 0.0
    %959 = vmatprep.subr.mxu0 0.0
    %960 = vmatpush1.msra.mxu0 0.0
    %961 = vmatprep.subr.mxu0 0.0
    %962 = vmatpush1.msra.mxu0 0.0
    %963 = vmatprep.subr.mxu0 0.0
    %964 = vmatpush1.msra.mxu0 0.0
    %965 = vmatprep.subr.mxu0 0.0
    %966 = vmatpush1.msra.mxu0 0.0
    %967 = vmatprep.subr.mxu0 0.0
    %968 = vmatpush1.msra.mxu0 0.0
    %969 = vmatprep.subr.mxu0 0.0
    %970 = vmatpush1.msra.mxu0 0.0
    %971 = vmatprep.subr.mxu0 0.0
    %972 = vmatpush1.msra.mxu0 0.0
    %973 = vmatprep.subr.mxu0 0.0
    %974 = vmatpush1.msra.mxu0 0.0
    %975 = vmatprep.subr.mxu0 0.0
    %976 = vmatpush1.msra.mxu0 0.0
    %977 = vmatprep.subr.mxu0 0.0
    %978 = vmatpush1.msra.mxu0 0.0
    %979 = vmatprep.subr.mxu0 0.0
    %980 = vmatpush1.msra.mxu0 0.0
    %981 = vmatprep.subr.mxu0 0.0
    %982 = vmatpush1.msra.mxu0 0.0
    %983 = vmatprep.subr.mxu0 0.0
    %984 = vmatpush1.msra.mxu0 0.0
    %985 = vmatprep.subr.mxu0 0.0
    %986 = vmatpush1.msra.mxu0 0.0
    %987 = vmatprep.subr.mxu0 0.0
    %988 = vmatpush1.msra.mxu0 0.0
    %989 = vmatprep.subr.mxu0 0.0
    %990 = vmatpush1.msra.mxu0 0.0
    %991 = vmatprep.subr.mxu0 0.0
    %992 = vmatpush1.msra.mxu0 0.0
    %993 = vmatprep.subr.mxu0 0.0
    %994 = vmatpush1.msra.mxu0 0.0
    %995 = vmatprep.subr.mxu0 0.0
    %996 = vmatpush1.msra.mxu0 0.0
    %997 = vmatprep.subr.mxu0 0.0
    %998 = vmatpush1.msra.mxu0 0.0
    %999 = vmatprep.subr.mxu0 0.0
    %1000 = vmatpush1.msra.mxu0 0.0
    %1001 = vmatprep.mubr.f32.mxu0 0.0
    %1002 = vmatmul.mubr.f32.gmra.mrb[0].mxu0 %v935
    %v1003 = vpop.f32.mrb[0].mxu0
    %v1004 = vadd.f32 0.0, %v1003
    %v1005 = vpop.f32.mrb[0].mxu0
    %1006 = vdwg.mxu0
    %1007 = vrot.lane.b32.xlu0 %v148, 64
    %v1008 = vpop.permute.xlu0 %1007
    %v1011 = vsel %vm160, %v849, 0
    %1013 = vmatprep.subr.mxu0 0.0
    %1014 = vmatpush1.msra.mxu0 %v1008
    %1015 = vmatprep.subr.mxu0 0.0
    %1016 = vmatpush1.msra.mxu0 0.0
    %1017 = vmatprep.subr.mxu0 0.0
    %1018 = vmatpush1.msra.mxu0 0.0
    %1019 = vmatprep.subr.mxu0 0.0
    %1020 = vmatpush1.msra.mxu0 0.0
    %1021 = vmatprep.subr.mxu0 0.0
    %1022 = vmatpush1.msra.mxu0 0.0
    %1023 = vmatprep.subr.mxu0 0.0
    %1024 = vmatpush1.msra.mxu0 0.0
    %1025 = vmatprep.subr.mxu0 0.0
    %1026 = vmatpush1.msra.mxu0 0.0
    %1027 = vmatprep.subr.mxu0 0.0
    %1028 = vmatpush1.msra.mxu0 0.0
    %1029 = vmatprep.subr.mxu0 0.0
    %1030 = vmatpush1.msra.mxu0 0.0
    %1031 = vmatprep.subr.mxu0 0.0
    %1032 = vmatpush1.msra.mxu0 0.0
    %1033 = vmatprep.subr.mxu0 0.0
    %1034 = vmatpush1.msra.mxu0 0.0
    %1035 = vmatprep.subr.mxu0 0.0
    %1036 = vmatpush1.msra.mxu0 0.0
    %1037 = vmatprep.subr.mxu0 0.0
    %1038 = vmatpush1.msra.mxu0 0.0
    %1039 = vmatprep.subr.mxu0 0.0
    %1040 = vmatpush1.msra.mxu0 0.0
    %1041 = vmatprep.subr.mxu0 0.0
    %1042 = vmatpush1.msra.mxu0 0.0
    %1043 = vmatprep.subr.mxu0 0.0
    %1044 = vmatpush1.msra.mxu0 0.0
    %1045 = vmatprep.subr.mxu0 0.0
    %1046 = vmatpush1.msra.mxu0 0.0
    %1047 = vmatprep.subr.mxu0 0.0
    %1048 = vmatpush1.msra.mxu0 0.0
    %1049 = vmatprep.subr.mxu0 0.0
    %1050 = vmatpush1.msra.mxu0 0.0
    %1051 = vmatprep.subr.mxu0 0.0
    %1052 = vmatpush1.msra.mxu0 0.0
    %1053 = vmatprep.subr.mxu0 0.0
    %1054 = vmatpush1.msra.mxu0 0.0
    %1055 = vmatprep.subr.mxu0 0.0
    %1056 = vmatpush1.msra.mxu0 0.0
    %1057 = vmatprep.subr.mxu0 0.0
    %1058 = vmatpush1.msra.mxu0 0.0
    %1059 = vmatprep.subr.mxu0 0.0
    %1060 = vmatpush1.msra.mxu0 0.0
    %1061 = vmatprep.subr.mxu0 0.0
    %1062 = vmatpush1.msra.mxu0 0.0
    %1063 = vmatprep.subr.mxu0 0.0
    %1064 = vmatpush1.msra.mxu0 0.0
    %1065 = vmatprep.subr.mxu0 0.0
    %1066 = vmatpush1.msra.mxu0 0.0
    %1067 = vmatprep.subr.mxu0 0.0
    %1068 = vmatpush1.msra.mxu0 0.0
    %1069 = vmatprep.subr.mxu0 0.0
    %1070 = vmatpush1.msra.mxu0 0.0
    %1071 = vmatprep.subr.mxu0 0.0
    %1072 = vmatpush1.msra.mxu0 0.0
    %1073 = vmatprep.subr.mxu0 0.0
    %1074 = vmatpush1.msra.mxu0 0.0
    %1075 = vmatprep.subr.mxu0 0.0
    %1076 = vmatpush1.msra.mxu0 0.0
    %1077 = vmatprep.mubr.f32.mxu0 0.0
    %1078 = vmatmul.mubr.f32.gmra.mrb[0].mxu0 %v1011
    %v1079 = vpop.f32.mrb[0].mxu0
    %v1080 = vadd.f32 0.0, %v1079
    %v1081 = vpop.f32.mrb[0].mxu0
    %1082 = vdwg.mxu0
    %1083 = vrot.lane.b32.xlu0 %v150, 64
    %v1084 = vpop.permute.xlu0 %1083
    %v1087 = vsel %vm160, %v850, 0
    %1089 = vmatprep.subr.mxu0 0.0
    %1090 = vmatpush1.msra.mxu0 %v1084
    %1091 = vmatprep.subr.mxu0 0.0
    %1092 = vmatpush1.msra.mxu0 0.0
    %1093 = vmatprep.subr.mxu0 0.0
    %1094 = vmatpush1.msra.mxu0 0.0
    %1095 = vmatprep.subr.mxu0 0.0
    %1096 = vmatpush1.msra.mxu0 0.0
    %1097 = vmatprep.subr.mxu0 0.0
    %1098 = vmatpush1.msra.mxu0 0.0
    %1099 = vmatprep.subr.mxu0 0.0
    %1100 = vmatpush1.msra.mxu0 0.0
    %1101 = vmatprep.subr.mxu0 0.0
    %1102 = vmatpush1.msra.mxu0 0.0
    %1103 = vmatprep.subr.mxu0 0.0
    %1104 = vmatpush1.msra.mxu0 0.0
    %1105 = vmatprep.subr.mxu0 0.0
    %1106 = vmatpush1.msra.mxu0 0.0
    %1107 = vmatprep.subr.mxu0 0.0
    %1108 = vmatpush1.msra.mxu0 0.0
    %1109 = vmatprep.subr.mxu0 0.0
    %1110 = vmatpush1.msra.mxu0 0.0
    %1111 = vmatprep.subr.mxu0 0.0
    %1112 = vmatpush1.msra.mxu0 0.0
    %1113 = vmatprep.subr.mxu0 0.0
    %1114 = vmatpush1.msra.mxu0 0.0
    %1115 = vmatprep.subr.mxu0 0.0
    %1116 = vmatpush1.msra.mxu0 0.0
    %1117 = vmatprep.subr.mxu0 0.0
    %1118 = vmatpush1.msra.mxu0 0.0
    %1119 = vmatprep.subr.mxu0 0.0
    %1120 = vmatpush1.msra.mxu0 0.0
    %1121 = vmatprep.subr.mxu0 0.0
    %1122 = vmatpush1.msra.mxu0 0.0
    %1123 = vmatprep.subr.mxu0 0.0
    %1124 = vmatpush1.msra.mxu0 0.0
    %1125 = vmatprep.subr.mxu0 0.0
    %1126 = vmatpush1.msra.mxu0 0.0
    %1127 = vmatprep.subr.mxu0 0.0
    %1128 = vmatpush1.msra.mxu0 0.0
    %1129 = vmatprep.subr.mxu0 0.0
    %1130 = vmatpush1.msra.mxu0 0.0
    %1131 = vmatprep.subr.mxu0 0.0
    %1132 = vmatpush1.msra.mxu0 0.0
    %1133 = vmatprep.subr.mxu0 0.0
    %1134 = vmatpush1.msra.mxu0 0.0
    %1135 = vmatprep.subr.mxu0 0.0
    %1136 = vmatpush1.msra.mxu0 0.0
    %1137 = vmatprep.subr.mxu0 0.0
    %1138 = vmatpush1.msra.mxu0 0.0
    %1139 = vmatprep.subr.mxu0 0.0
    %1140 = vmatpush1.msra.mxu0 0.0
    %1141 = vmatprep.subr.mxu0 0.0
    %1142 = vmatpush1.msra.mxu0 0.0
    %1143 = vmatprep.subr.mxu0 0.0
    %1144 = vmatpush1.msra.mxu0 0.0
    %1145 = vmatprep.subr.mxu0 0.0
    %1146 = vmatpush1.msra.mxu0 0.0
    %1147 = vmatprep.subr.mxu0 0.0
    %1148 = vmatpush1.msra.mxu0 0.0
    %1149 = vmatprep.subr.mxu0 0.0
    %1150 = vmatpush1.msra.mxu0 0.0
    %1151 = vmatprep.subr.mxu0 0.0
    %1152 = vmatpush1.msra.mxu0 0.0
    %1153 = vmatprep.mubr.f32.mxu0 0.0
    %1154 = vmatmul.mubr.f32.gmra.mrb[0].mxu0 %v1087
    %v1155 = vpop.f32.mrb[0].mxu0
    %v1156 = vadd.f32 0.0, %v1155
    %v1157 = vpop.f32.mrb[0].mxu0
    %1158 = vdwg.mxu0
    %1159 = vrot.lane.b32.xlu0 %v141, 64
    %v1160 = vpop.permute.xlu0 %1159
    %v1163 = vsel %vm160, %v851, 0
    %1165 = vmatprep.subr.mxu0 0.0
    %1166 = vmatpush1.msra.mxu0 %v1160
    %1167 = vmatprep.subr.mxu0 0.0
    %1168 = vmatpush1.msra.mxu0 0.0
    %1169 = vmatprep.subr.mxu0 0.0
    %1170 = vmatpush1.msra.mxu0 0.0
    %1171 = vmatprep.subr.mxu0 0.0
    %1172 = vmatpush1.msra.mxu0 0.0
    %1173 = vmatprep.subr.mxu0 0.0
    %1174 = vmatpush1.msra.mxu0 0.0
    %1175 = vmatprep.subr.mxu0 0.0
    %1176 = vmatpush1.msra.mxu0 0.0
    %1177 = vmatprep.subr.mxu0 0.0
    %1178 = vmatpush1.msra.mxu0 0.0
    %1179 = vmatprep.subr.mxu0 0.0
    %1180 = vmatpush1.msra.mxu0 0.0
    %1181 = vmatprep.subr.mxu0 0.0
    %1182 = vmatpush1.msra.mxu0 0.0
    %1183 = vmatprep.subr.mxu0 0.0
    %1184 = vmatpush1.msra.mxu0 0.0
    %1185 = vmatprep.subr.mxu0 0.0
    %1186 = vmatpush1.msra.mxu0 0.0
    %1187 = vmatprep.subr.mxu0 0.0
    %1188 = vmatpush1.msra.mxu0 0.0
    %1189 = vmatprep.subr.mxu0 0.0
    %1190 = vmatpush1.msra.mxu0 0.0
    %1191 = vmatprep.subr.mxu0 0.0
    %1192 = vmatpush1.msra.mxu0 0.0
    %1193 = vmatprep.subr.mxu0 0.0
    %1194 = vmatpush1.msra.mxu0 0.0
    %1195 = vmatprep.subr.mxu0 0.0
    %1196 = vmatpush1.msra.mxu0 0.0
    %1197 = vmatprep.subr.mxu0 0.0
    %1198 = vmatpush1.msra.mxu0 0.0
    %1199 = vmatprep.subr.mxu0 0.0
    %1200 = vmatpush1.msra.mxu0 0.0
    %1201 = vmatprep.subr.mxu0 0.0
    %1202 = vmatpush1.msra.mxu0 0.0
    %1203 = vmatprep.subr.mxu0 0.0
    %1204 = vmatpush1.msra.mxu0 0.0
    %1205 = vmatprep.subr.mxu0 0.0
    %1206 = vmatpush1.msra.mxu0 0.0
    %1207 = vmatprep.subr.mxu0 0.0
    %1208 = vmatpush1.msra.mxu0 0.0
    %1209 = vmatprep.subr.mxu0 0.0
    %1210 = vmatpush1.msra.mxu0 0.0
    %1211 = vmatprep.subr.mxu0 0.0
    %1212 = vmatpush1.msra.mxu0 0.0
    %1213 = vmatprep.subr.mxu0 0.0
    %1214 = vmatpush1.msra.mxu0 0.0
    %1215 = vmatprep.subr.mxu0 0.0
    %1216 = vmatpush1.msra.mxu0 0.0
    %1217 = vmatprep.subr.mxu0 0.0
    %1218 = vmatpush1.msra.mxu0 0.0
    %1219 = vmatprep.subr.mxu0 0.0
    %1220 = vmatpush1.msra.mxu0 0.0
    %1221 = vmatprep.subr.mxu0 0.0
    %1222 = vmatpush1.msra.mxu0 0.0
    %1223 = vmatprep.subr.mxu0 0.0
    %1224 = vmatpush1.msra.mxu0 0.0
    %1225 = vmatprep.subr.mxu0 0.0
    %1226 = vmatpush1.msra.mxu0 0.0
    %1227 = vmatprep.subr.mxu0 0.0
    %1228 = vmatpush1.msra.mxu0 0.0
    %1229 = vmatprep.mubr.f32.mxu0 0.0
    %1230 = vmatmul.mubr.f32.gmra.mrb[0].mxu0 %v1163
    %v1231 = vpop.f32.mrb[0].mxu0
    %v1232 = vadd.f32 0.0, %v1231
    %v1233 = vpop.f32.mrb[0].mxu0
    %1234 = vdwg.mxu0
    %1235 = vrot.lane.b32.xlu0 %v153, 64
    %v1236 = vpop.permute.xlu0 %1235
    %v1239 = vsel %vm160, %v852, 0
    %1241 = vmatprep.subr.mxu0 0.0
    %1242 = vmatpush1.msra.mxu0 %v1236
    %1243 = vmatprep.subr.mxu0 0.0
    %1244 = vmatpush1.msra.mxu0 0.0
    %1245 = vmatprep.subr.mxu0 0.0
    %1246 = vmatpush1.msra.mxu0 0.0
    %1247 = vmatprep.subr.mxu0 0.0
    %1248 = vmatpush1.msra.mxu0 0.0
    %1249 = vmatprep.subr.mxu0 0.0
    %1250 = vmatpush1.msra.mxu0 0.0
    %1251 = vmatprep.subr.mxu0 0.0
    %1252 = vmatpush1.msra.mxu0 0.0
    %1253 = vmatprep.subr.mxu0 0.0
    %1254 = vmatpush1.msra.mxu0 0.0
    %1255 = vmatprep.subr.mxu0 0.0
    %1256 = vmatpush1.msra.mxu0 0.0
    %1257 = vmatprep.subr.mxu0 0.0
    %1258 = vmatpush1.msra.mxu0 0.0
    %1259 = vmatprep.subr.mxu0 0.0
    %1260 = vmatpush1.msra.mxu0 0.0
    %1261 = vmatprep.subr.mxu0 0.0
    %1262 = vmatpush1.msra.mxu0 0.0
    %1263 = vmatprep.subr.mxu0 0.0
    %1264 = vmatpush1.msra.mxu0 0.0
    %1265 = vmatprep.subr.mxu0 0.0
    %1266 = vmatpush1.msra.mxu0 0.0
    %1267 = vmatprep.subr.mxu0 0.0
    %1268 = vmatpush1.msra.mxu0 0.0
    %1269 = vmatprep.subr.mxu0 0.0
    %1270 = vmatpush1.msra.mxu0 0.0
    %1271 = vmatprep.subr.mxu0 0.0
    %1272 = vmatpush1.msra.mxu0 0.0
    %1273 = vmatprep.subr.mxu0 0.0
    %1274 = vmatpush1.msra.mxu0 0.0
    %1275 = vmatprep.subr.mxu0 0.0
    %1276 = vmatpush1.msra.mxu0 0.0
    %1277 = vmatprep.subr.mxu0 0.0
    %1278 = vmatpush1.msra.mxu0 0.0
    %1279 = vmatprep.subr.mxu0 0.0
    %1280 = vmatpush1.msra.mxu0 0.0
    %1281 = vmatprep.subr.mxu0 0.0
    %1282 = vmatpush1.msra.mxu0 0.0
    %1283 = vmatprep.subr.mxu0 0.0
    %1284 = vmatpush1.msra.mxu0 0.0
    %1285 = vmatprep.subr.mxu0 0.0
    %1286 = vmatpush1.msra.mxu0 0.0
    %1287 = vmatprep.subr.mxu0 0.0
    %1288 = vmatpush1.msra.mxu0 0.0
    %1289 = vmatprep.subr.mxu0 0.0
    %1290 = vmatpush1.msra.mxu0 0.0
    %1291 = vmatprep.subr.mxu0 0.0
    %1292 = vmatpush1.msra.mxu0 0.0
    %1293 = vmatprep.subr.mxu0 0.0
    %1294 = vmatpush1.msra.mxu0 0.0
    %1295 = vmatprep.subr.mxu0 0.0
    %1296 = vmatpush1.msra.mxu0 0.0
    %1297 = vmatprep.subr.mxu0 0.0
    %1298 = vmatpush1.msra.mxu0 0.0
    %1299 = vmatprep.subr.mxu0 0.0
    %1300 = vmatpush1.msra.mxu0 0.0
    %1301 = vmatprep.subr.mxu0 0.0
    %1302 = vmatpush1.msra.mxu0 0.0
    %1303 = vmatprep.subr.mxu0 0.0
    %1304 = vmatpush1.msra.mxu0 0.0
    %1305 = vmatprep.mubr.f32.mxu0 0.0
    %1306 = vmatmul.mubr.f32.gmra.mrb[0].mxu0 %v1239
    %v1307 = vpop.f32.mrb[0].mxu0
    %v1308 = vadd.f32 0.0, %v1307
    %v1309 = vpop.f32.mrb[0].mxu0
    %1310 = vdwg.mxu0
    %1311 = vrot.lane.b32.xlu0 %v155, 64
    %v1312 = vpop.permute.xlu0 %1311
    %v1315 = vsel %vm160, %v853, 0
    %1317 = vmatprep.subr.mxu0 0.0
    %1318 = vmatpush1.msra.mxu0 %v1312
    %1319 = vmatprep.subr.mxu0 0.0
    %1320 = vmatpush1.msra.mxu0 0.0
    %1321 = vmatprep.subr.mxu0 0.0
    %1322 = vmatpush1.msra.mxu0 0.0
    %1323 = vmatprep.subr.mxu0 0.0
    %1324 = vmatpush1.msra.mxu0 0.0
    %1325 = vmatprep.subr.mxu0 0.0
    %1326 = vmatpush1.msra.mxu0 0.0
    %1327 = vmatprep.subr.mxu0 0.0
    %1328 = vmatpush1.msra.mxu0 0.0
    %1329 = vmatprep.subr.mxu0 0.0
    %1330 = vmatpush1.msra.mxu0 0.0
    %1331 = vmatprep.subr.mxu0 0.0
    %1332 = vmatpush1.msra.mxu0 0.0
    %1333 = vmatprep.subr.mxu0 0.0
    %1334 = vmatpush1.msra.mxu0 0.0
    %1335 = vmatprep.subr.mxu0 0.0
    %1336 = vmatpush1.msra.mxu0 0.0
    %1337 = vmatprep.subr.mxu0 0.0
    %1338 = vmatpush1.msra.mxu0 0.0
    %1339 = vmatprep.subr.mxu0 0.0
    %1340 = vmatpush1.msra.mxu0 0.0
    %1341 = vmatprep.subr.mxu0 0.0
    %1342 = vmatpush1.msra.mxu0 0.0
    %1343 = vmatprep.subr.mxu0 0.0
    %1344 = vmatpush1.msra.mxu0 0.0
    %1345 = vmatprep.subr.mxu0 0.0
    %1346 = vmatpush1.msra.mxu0 0.0
    %1347 = vmatprep.subr.mxu0 0.0
    %1348 = vmatpush1.msra.mxu0 0.0
    %1349 = vmatprep.subr.mxu0 0.0
    %1350 = vmatpush1.msra.mxu0 0.0
    %1351 = vmatprep.subr.mxu0 0.0
    %1352 = vmatpush1.msra.mxu0 0.0
    %1353 = vmatprep.subr.mxu0 0.0
    %1354 = vmatpush1.msra.mxu0 0.0
    %1355 = vmatprep.subr.mxu0 0.0
    %1356 = vmatpush1.msra.mxu0 0.0
    %1357 = vmatprep.subr.mxu0 0.0
    %1358 = vmatpush1.msra.mxu0 0.0
    %1359 = vmatprep.subr.mxu0 0.0
    %1360 = vmatpush1.msra.mxu0 0.0
    %1361 = vmatprep.subr.mxu0 0.0
    %1362 = vmatpush1.msra.mxu0 0.0
    %1363 = vmatprep.subr.mxu0 0.0
    %1364 = vmatpush1.msra.mxu0 0.0
    %1365 = vmatprep.subr.mxu0 0.0
    %1366 = vmatpush1.msra.mxu0 0.0
    %1367 = vmatprep.subr.mxu0 0.0
    %1368 = vmatpush1.msra.mxu0 0.0
    %1369 = vmatprep.subr.mxu0 0.0
    %1370 = vmatpush1.msra.mxu0 0.0
    %1371 = vmatprep.subr.mxu0 0.0
    %1372 = vmatpush1.msra.mxu0 0.0
    %1373 = vmatprep.subr.mxu0 0.0
    %1374 = vmatpush1.msra.mxu0 0.0
    %1375 = vmatprep.subr.mxu0 0.0
    %1376 = vmatpush1.msra.mxu0 0.0
    %1377 = vmatprep.subr.mxu0 0.0
    %1378 = vmatpush1.msra.mxu0 0.0
    %1379 = vmatprep.subr.mxu0 0.0
    %1380 = vmatpush1.msra.mxu0 0.0
    %1381 = vmatprep.mubr.f32.mxu0 0.0
    %1382 = vmatmul.mubr.f32.gmra.mrb[0].mxu0 %v1315
    %v1383 = vpop.f32.mrb[0].mxu0
    %v1384 = vadd.f32 0.0, %v1383
    %v1385 = vpop.f32.mrb[0].mxu0
    %1386 = vdwg.mxu0
    %1387 = vrot.lane.b32.xlu0 %v157, 64
    %v1388 = vpop.permute.xlu0 %1387
    %v1391 = vsel %vm160, %v854, 0
    %1393 = vmatprep.subr.mxu0 0.0
    %1394 = vmatpush1.msra.mxu0 %v1388
    %1395 = vmatprep.subr.mxu0 0.0
    %1396 = vmatpush1.msra.mxu0 0.0
    %1397 = vmatprep.subr.mxu0 0.0
    %1398 = vmatpush1.msra.mxu0 0.0
    %1399 = vmatprep.subr.mxu0 0.0
    %1400 = vmatpush1.msra.mxu0 0.0
    %1401 = vmatprep.subr.mxu0 0.0
    %1402 = vmatpush1.msra.mxu0 0.0
    %1403 = vmatprep.subr.mxu0 0.0
    %1404 = vmatpush1.msra.mxu0 0.0
    %1405 = vmatprep.subr.mxu0 0.0
    %1406 = vmatpush1.msra.mxu0 0.0
    %1407 = vmatprep.subr.mxu0 0.0
    %1408 = vmatpush1.msra.mxu0 0.0
    %1409 = vmatprep.subr.mxu0 0.0
    %1410 = vmatpush1.msra.mxu0 0.0
    %1411 = vmatprep.subr.mxu0 0.0
    %1412 = vmatpush1.msra.mxu0 0.0
    %1413 = vmatprep.subr.mxu0 0.0
    %1414 = vmatpush1.msra.mxu0 0.0
    %1415 = vmatprep.subr.mxu0 0.0
    %1416 = vmatpush1.msra.mxu0 0.0
    %1417 = vmatprep.subr.mxu0 0.0
    %1418 = vmatpush1.msra.mxu0 0.0
    %1419 = vmatprep.subr.mxu0 0.0
    %1420 = vmatpush1.msra.mxu0 0.0
    %1421 = vmatprep.subr.mxu0 0.0
    %1422 = vmatpush1.msra.mxu0 0.0
    %1423 = vmatprep.subr.mxu0 0.0
    %1424 = vmatpush1.msra.mxu0 0.0
    %1425 = vmatprep.subr.mxu0 0.0
    %1426 = vmatpush1.msra.mxu0 0.0
    %1427 = vmatprep.subr.mxu0 0.0
    %1428 = vmatpush1.msra.mxu0 0.0
    %1429 = vmatprep.subr.mxu0 0.0
    %1430 = vmatpush1.msra.mxu0 0.0
    %1431 = vmatprep.subr.mxu0 0.0
    %1432 = vmatpush1.msra.mxu0 0.0
    %1433 = vmatprep.subr.mxu0 0.0
    %1434 = vmatpush1.msra.mxu0 0.0
    %1435 = vmatprep.subr.mxu0 0.0
    %1436 = vmatpush1.msra.mxu0 0.0
    %1437 = vmatprep.subr.mxu0 0.0
    %1438 = vmatpush1.msra.mxu0 0.0
    %1439 = vmatprep.subr.mxu0 0.0
    %1440 = vmatpush1.msra.mxu0 0.0
    %1441 = vmatprep.subr.mxu0 0.0
    %1442 = vmatpush1.msra.mxu0 0.0
    %1443 = vmatprep.subr.mxu0 0.0
    %1444 = vmatpush1.msra.mxu0 0.0
    %1445 = vmatprep.subr.mxu0 0.0
    %1446 = vmatpush1.msra.mxu0 0.0
    %1447 = vmatprep.subr.mxu0 0.0
    %1448 = vmatpush1.msra.mxu0 0.0
    %1449 = vmatprep.subr.mxu0 0.0
    %1450 = vmatpush1.msra.mxu0 0.0
    %1451 = vmatprep.subr.mxu0 0.0
    %1452 = vmatpush1.msra.mxu0 0.0
    %1453 = vmatprep.subr.mxu0 0.0
    %1454 = vmatpush1.msra.mxu0 0.0
    %1455 = vmatprep.subr.mxu0 0.0
    %1456 = vmatpush1.msra.mxu0 0.0
    %1457 = vmatprep.mubr.f32.mxu0 0.0
    %1458 = vmatmul.mubr.f32.gmra.mrb[0].mxu0 %v1391
    %v1459 = vpop.f32.mrb[0].mxu0
    %v1460 = vadd.f32 0.0, %v1459
    %v1461 = vpop.f32.mrb[0].mxu0
    %1462 = vdwg.mxu0
    %1464 = vrot.lane.b32.xlu0 %v1004, 8
    %v1465 = vpop.permute.xlu0 %1464
    %1468 = vrot.lane.b32.xlu0 %v1080, 16
    %v1469 = vpop.permute.xlu0 %1468
    %1472 = vrot.lane.b32.xlu0 %v1156, 24
    %v1473 = vpop.permute.xlu0 %1472
    %v1475 = vsel %vm160, %v928, %v1465
    %vm1476 = vcmask 130048
    %v1477 = vsel %vm1476, %v1475, %v1469
    %vm1478 = vcmask 195584
    %v1479 = vsel %vm1478, %v1477, %v1473
    %1481 = vrot.lane.b32.xlu0 %v1308, 8
    %v1482 = vpop.permute.xlu0 %1481
    %1485 = vrot.lane.b32.xlu0 %v1384, 16
    %v1486 = vpop.permute.xlu0 %1485
    %1489 = vrot.lane.b32.xlu0 %v1460, 24
    %v1490 = vpop.permute.xlu0 %1489
    %v1492 = vsel %vm160, %v1232, %v1482
    %v1493 = vsel %vm1476, %v1492, %v1486
    %v1494 = vsel %vm1478, %v1493, %v1490
    %v1495 = vld [vmem:[%s2] sm:$0xff]
    %v1496 = vld [vmem:[%s2 + $0x8] sm:$0xff]
    %v1497 = vld [vmem:[%s2 + $0x10] sm:$0xff]
    %v1498 = vld [vmem:[%s2 + $0x18] sm:$0xff]
    %v1499 = vld [vmem:[%s3] sm:$0x1]
    %v1501 = vlaneseq
    %v1502 = vshrl.u32 %v1501, 7
    %v1503 = vsub.s32 0, %v1502
    %v1504 = vrot.slane %v1499, %v1503
    %v1507 = vsel %vm62, %v1479, 0
    %v1510 = vsel %vm62, %v1494, 0
    %1512 = vmatprep.subr.mxu0 0.0
    %1513 = vmatpush1.msra.mxu0 %v1495
    %1514 = vmatprep.subr.mxu0 0.0
    %1515 = vmatpush1.msra.mxu0 %v1496
    %1516 = vmatprep.subr.mxu0 0.0
    %1517 = vmatpush1.msra.mxu0 %v1497
    %1518 = vmatprep.subr.mxu0 0.0
    %1519 = vmatpush1.msra.mxu0 %v1498
    %1520 = vmatprep.subr.mxu0 0.0
    %1521 = vmatpush1.msra.mxu0 0.0
    %1522 = vmatprep.subr.mxu0 0.0
    %1523 = vmatpush1.msra.mxu0 0.0
    %1524 = vmatprep.subr.mxu0 0.0
    %1525 = vmatpush1.msra.mxu0 0.0
    %1526 = vmatprep.subr.mxu0 0.0
    %1527 = vmatpush1.msra.mxu0 0.0
    %1528 = vmatprep.subr.mxu0 0.0
    %1529 = vmatpush1.msra.mxu0 0.0
    %1530 = vmatprep.subr.mxu0 0.0
    %1531 = vmatpush1.msra.mxu0 0.0
    %1532 = vmatprep.subr.mxu0 0.0
    %1533 = vmatpush1.msra.mxu0 0.0
    %1534 = vmatprep.subr.mxu0 0.0
    %1535 = vmatpush1.msra.mxu0 0.0
    %1536 = vmatprep.subr.mxu0 0.0
    %1537 = vmatpush1.msra.mxu0 0.0
    %1538 = vmatprep.subr.mxu0 0.0
    %1539 = vmatpush1.msra.mxu0 0.0
    %1540 = vmatprep.subr.mxu0 0.0
    %1541 = vmatpush1.msra.mxu0 0.0
    %1542 = vmatprep.subr.mxu0 0.0
    %1543 = vmatpush1.msra.mxu0 0.0
    %1544 = vmatprep.subr.mxu0 0.0
    %1545 = vmatpush1.msra.mxu0 0.0
    %1546 = vmatprep.subr.mxu0 0.0
    %1547 = vmatpush1.msra.mxu0 0.0
    %1548 = vmatprep.subr.mxu0 0.0
    %1549 = vmatpush1.msra.mxu0 0.0
    %1550 = vmatprep.subr.mxu0 0.0
    %1551 = vmatpush1.msra.mxu0 0.0
    %1552 = vmatprep.subr.mxu0 0.0
    %1553 = vmatpush1.msra.mxu0 0.0
    %1554 = vmatprep.subr.mxu0 0.0
    %1555 = vmatpush1.msra.mxu0 0.0
    %1556 = vmatprep.subr.mxu0 0.0
    %1557 = vmatpush1.msra.mxu0 0.0
    %1558 = vmatprep.subr.mxu0 0.0
    %1559 = vmatpush1.msra.mxu0 0.0
    %1560 = vmatprep.subr.mxu0 0.0
    %1561 = vmatpush1.msra.mxu0 0.0
    %1562 = vmatprep.subr.mxu0 0.0
    %1563 = vmatpush1.msra.mxu0 0.0
    %1564 = vmatprep.subr.mxu0 0.0
    %1565 = vmatpush1.msra.mxu0 0.0
    %1566 = vmatprep.subr.mxu0 0.0
    %1567 = vmatpush1.msra.mxu0 0.0
    %1568 = vmatprep.subr.mxu0 0.0
    %1569 = vmatpush1.msra.mxu0 0.0
    %1570 = vmatprep.subr.mxu0 0.0
    %1571 = vmatpush1.msra.mxu0 0.0
    %1572 = vmatprep.subr.mxu0 0.0
    %1573 = vmatpush1.msra.mxu0 0.0
    %1574 = vmatprep.subr.mxu0 0.0
    %1575 = vmatpush1.msra.mxu0 0.0
    %1576 = vmatprep.mubr.f32.mxu0 0.0
    %1577 = vmatmul.mubr.f32.gmra.mrb[0].mxu0 %v1507
    %v1578 = vpop.f32.mrb[0].mxu0
    %v1579 = vadd.f32 %v1504, %v1578
    %v1580 = vpop.f32.mrb[0].mxu0
    %1581 = vmatprep.mubr.f32.mxu0 0.0
    %1582 = vmatmul.mubr.f32.gmra.mrb[0].mxu0 %v1510
    %v1583 = vpop.f32.mrb[0].mxu0
    %v1584 = vadd.f32 %v1504, %v1583
    %v1585 = vpop.f32.mrb[0].mxu0
    %1586 = vdwg.mxu0
    %v1587 = vadd.f32 %v56, %v1579
    %v1588 = vadd.f32 %v57, %v1584
    %v1589 = vsel %vm62, %v1587, 0.0
    %1590 = vadd.xlane.f32.xlu0 %v1589
    %v1591 = vpop.xlane.xlu0 %1590
    %v1592 = vsel %vm62, %v1588, 0.0
    %1593 = vadd.xlane.f32.xlu0 %v1592
    %v1594 = vpop.xlane.xlu0 %1593
    %v1595 = vrcp.pop 32.0
    %v1596 = vmul.f32 %v1591, %v1595
    %v1597 = vmul.f32 %v1594, %v1595
    %v1598 = vsub.f32 %v1587, %v1596
    %v1599 = vsub.f32 %v1588, %v1597
    %v1600 = vmul.f32 %v1598, %v1598
    %v1601 = vmul.f32 %v1599, %v1599
    %v1602 = vsel %vm62, %v1600, 0.0
    %1603 = vadd.xlane.f32.xlu0 %v1602
    %v1604 = vpop.xlane.xlu0 %1603
    %v1605 = vsel %vm62, %v1601, 0.0
    %1606 = vadd.xlane.f32.xlu0 %v1605
    %v1607 = vpop.xlane.xlu0 %1606
    %v1608 = vmul.f32 %v1604, %v1595
    %v1609 = vmul.f32 %v1607, %v1595
    %v1610 = vadd.f32 %v1608, 1e-05
    %v1611 = vadd.f32 %v1609, 1e-05
    %v1612 = vrsqrt.pop %v1610
    %v1613 = vrsqrt.pop %v1611
    %v1614 = vmul.f32 %v1598, %v1612
    %v1615 = vmul.f32 %v1599, %v1613
    %v1616 = vld [vmem:[%s4] sm:$0x1]
    %v1618 = vlaneseq
    %v1619 = vshrl.u32 %v1618, 7
    %v1620 = vsub.s32 0, %v1619
    %v1621 = vrot.slane %v1616, %v1620
    %v1623 = vmul.f32 %v1614, %v1621
    %v1624 = vmul.f32 %v1615, %v1621
    %v1625 = vld [vmem:[%s5] sm:$0x1]
    %v1627 = vlaneseq
    %v1628 = vshrl.u32 %v1627, 7
    %v1629 = vsub.s32 0, %v1628
    %v1630 = vrot.slane %v1625, %v1629
    %v1632 = vadd.f32 %v1623, %v1630
    %v1633 = vadd.f32 %v1624, %v1630
    %v1634 = vld [vmem:[%s6] sm:$0xff]
    %v1635 = vld [vmem:[%s6 + $0x8] sm:$0xff]
    %v1636 = vld [vmem:[%s6 + $0x10] sm:$0xff]
    %v1637 = vld [vmem:[%s6 + $0x18] sm:$0xff]
    %v1638 = vld [vmem:[%s7] sm:$0x1]
    %v1640 = vlaneseq
    %v1641 = vshrl.u32 %v1640, 7
    %v1642 = vsub.s32 0, %v1641
    %v1643 = vrot.slane %v1638, %v1642
    %v1646 = vsel %vm62, %v1632, 0
    %v1649 = vsel %vm62, %v1633, 0
    %1651 = vmatprep.subr.mxu0 0.0
    %1652 = vmatpush1.msra.mxu0 %v1634
    %1653 = vmatprep.subr.mxu0 0.0
    %1654 = vmatpush1.msra.mxu0 %v1635
    %1655 = vmatprep.subr.mxu0 0.0
    %1656 = vmatpush1.msra.mxu0 %v1636
    %1657 = vmatprep.subr.mxu0 0.0
    %1658 = vmatpush1.msra.mxu0 %v1637
    %1659 = vmatprep.subr.mxu0 0.0
    %1660 = vmatpush1.msra.mxu0 0.0
    %1661 = vmatprep.subr.mxu0 0.0
    %1662 = vmatpush1.msra.mxu0 0.0
    %1663 = vmatprep.subr.mxu0 0.0
    %1664 = vmatpush1.msra.mxu0 0.0
    %1665 = vmatprep.subr.mxu0 0.0
    %1666 = vmatpush1.msra.mxu0 0.0
    %1667 = vmatprep.subr.mxu0 0.0
    %1668 = vmatpush1.msra.mxu0 0.0
    %1669 = vmatprep.subr.mxu0 0.0
    %1670 = vmatpush1.msra.mxu0 0.0
    %1671 = vmatprep.subr.mxu0 0.0
    %1672 = vmatpush1.msra.mxu0 0.0
    %1673 = vmatprep.subr.mxu0 0.0
    %1674 = vmatpush1.msra.mxu0 0.0
    %1675 = vmatprep.subr.mxu0 0.0
    %1676 = vmatpush1.msra.mxu0 0.0
    %1677 = vmatprep.subr.mxu0 0.0
    %1678 = vmatpush1.msra.mxu0 0.0
    %1679 = vmatprep.subr.mxu0 0.0
    %1680 = vmatpush1.msra.mxu0 0.0
    %1681 = vmatprep.subr.mxu0 0.0
    %1682 = vmatpush1.msra.mxu0 0.0
    %1683 = vmatprep.subr.mxu0 0.0
    %1684 = vmatpush1.msra.mxu0 0.0
    %1685 = vmatprep.subr.mxu0 0.0
    %1686 = vmatpush1.msra.mxu0 0.0
    %1687 = vmatprep.subr.mxu0 0.0
    %1688 = vmatpush1.msra.mxu0 0.0
    %1689 = vmatprep.subr.mxu0 0.0
    %1690 = vmatpush1.msra.mxu0 0.0
    %1691 = vmatprep.subr.mxu0 0.0
    %1692 = vmatpush1.msra.mxu0 0.0
    %1693 = vmatprep.subr.mxu0 0.0
    %1694 = vmatpush1.msra.mxu0 0.0
    %1695 = vmatprep.subr.mxu0 0.0
    %1696 = vmatpush1.msra.mxu0 0.0
    %1697 = vmatprep.subr.mxu0 0.0
    %1698 = vmatpush1.msra.mxu0 0.0
    %1699 = vmatprep.subr.mxu0 0.0
    %1700 = vmatpush1.msra.mxu0 0.0
    %1701 = vmatprep.subr.mxu0 0.0
    %1702 = vmatpush1.msra.mxu0 0.0
    %1703 = vmatprep.subr.mxu0 0.0
    %1704 = vmatpush1.msra.mxu0 0.0
    %1705 = vmatprep.subr.mxu0 0.0
    %1706 = vmatpush1.msra.mxu0 0.0
    %1707 = vmatprep.subr.mxu0 0.0
    %1708 = vmatpush1.msra.mxu0 0.0
    %1709 = vmatprep.subr.mxu0 0.0
    %1710 = vmatpush1.msra.mxu0 0.0
    %1711 = vmatprep.subr.mxu0 0.0
    %1712 = vmatpush1.msra.mxu0 0.0
    %1713 = vmatprep.subr.mxu0 0.0
    %1714 = vmatpush1.msra.mxu0 0.0
    %1715 = vmatprep.mubr.f32.mxu0 0.0
    %1716 = vmatmul.mubr.f32.gmra.mrb[0].mxu0 %v1646
    %v1717 = vpop.f32.mrb[0].mxu0
    %v1718 = vadd.f32 %v1643, %v1717
    %v1719 = vpop.f32.mrb[0].mxu0
    %1720 = vmatprep.mubr.f32.mxu0 0.0
    %1721 = vmatmul.mubr.f32.gmra.mrb[0].mxu0 %v1649
    %v1722 = vpop.f32.mrb[0].mxu0
    %v1723 = vadd.f32 %v1643, %v1722
    %v1724 = vpop.f32.mrb[0].mxu0
    %1725 = vdwg.mxu0
    %v1726 = vmul.f32 %v1718, 0.5
    %v1727 = vmul.f32 %v1723, 0.5
    %v1728 = vmul.f32 %v1718, 0.70710677
    %v1729 = vmul.f32 %v1723, 0.70710677
    %v1730 = verf.f32.pop %v1728
    %v1731 = verf.f32.pop %v1729
    %v1732 = vadd.f32 %v1730, 1.0
    %v1733 = vadd.f32 %v1731, 1.0
    %v1734 = vmul.f32 %v1726, %v1732
    %v1735 = vmul.f32 %v1727, %v1733
    %v1736 = vld [vmem:[%s8] sm:$0xff]
    %v1737 = vld [vmem:[%s8 + $0x8] sm:$0xff]
    %v1738 = vld [vmem:[%s8 + $0x10] sm:$0xff]
    %v1739 = vld [vmem:[%s8 + $0x18] sm:$0xff]
    %v1740 = vld [vmem:[%s8 + $0x20] sm:$0xff]
    %v1741 = vld [vmem:[%s8 + $0x28] sm:$0xff]
    %v1742 = vld [vmem:[%s8 + $0x30] sm:$0xff]
    %v1743 = vld [vmem:[%s8 + $0x38] sm:$0xff]
    %v1744 = vld [vmem:[%s9] sm:$0x1]
    %v1746 = vlaneseq
    %v1747 = vshrl.u32 %v1746, 7
    %v1748 = vsub.s32 0, %v1747
    %v1749 = vrot.slane %v1744, %v1748
    %vm1751 = vcmask 523264
    %v1753 = vsel %vm1751, %v1734, 0
    %v1756 = vsel %vm1751, %v1735, 0
    %1758 = vmatprep.subr.mxu0 0.0
    %1759 = vmatpush1.msra.mxu0 %v1736
    %1760 = vmatprep.subr.mxu0 0.0
    %1761 = vmatpush1.msra.mxu0 %v1737
    %1762 = vmatprep.subr.mxu0 0.0
    %1763 = vmatpush1.msra.mxu0 %v1738
    %1764 = vmatprep.subr.mxu0 0.0
    %1765 = vmatpush1.msra.mxu0 %v1739
    %1766 = vmatprep.subr.mxu0 0.0
    %1767 = vmatpush1.msra.mxu0 %v1740
    %1768 = vmatprep.subr.mxu0 0.0
    %1769 = vmatpush1.msra.mxu0 %v1741
    %1770 = vmatprep.subr.mxu0 0.0
    %1771 = vmatpush1.msra.mxu0 %v1742
    %1772 = vmatprep.subr.mxu0 0.0
    %1773 = vmatpush1.msra.mxu0 %v1743
    %1774 = vmatprep.subr.mxu0 0.0
    %1775 = vmatpush1.msra.mxu0 0.0
    %1776 = vmatprep.subr.mxu0 0.0
    %1777 = vmatpush1.msra.mxu0 0.0
    %1778 = vmatprep.subr.mxu0 0.0
    %1779 = vmatpush1.msra.mxu0 0.0
    %1780 = vmatprep.subr.mxu0 0.0
    %1781 = vmatpush1.msra.mxu0 0.0
    %1782 = vmatprep.subr.mxu0 0.0
    %1783 = vmatpush1.msra.mxu0 0.0
    %1784 = vmatprep.subr.mxu0 0.0
    %1785 = vmatpush1.msra.mxu0 0.0
    %1786 = vmatprep.subr.mxu0 0.0
    %1787 = vmatpush1.msra.mxu0 0.0
    %1788 = vmatprep.subr.mxu0 0.0
    %1789 = vmatpush1.msra.mxu0 0.0
    %1790 = vmatprep.subr.mxu0 0.0
    %1791 = vmatpush1.msra.mxu0 0.0
    %1792 = vmatprep.subr.mxu0 0.0
    %1793 = vmatpush1.msra.mxu0 0.0
    %1794 = vmatprep.subr.mxu0 0.0
    %1795 = vmatpush1.msra.mxu0 0.0
    %1796 = vmatprep.subr.mxu0 0.0
    %1797 = vmatpush1.msra.mxu0 0.0
    %1798 = vmatprep.subr.mxu0 0.0
    %1799 = vmatpush1.msra.mxu0 0.0
    %1800 = vmatprep.subr.mxu0 0.0
    %1801 = vmatpush1.msra.mxu0 0.0
    %1802 = vmatprep.subr.mxu0 0.0
    %1803 = vmatpush1.msra.mxu0 0.0
    %1804 = vmatprep.subr.mxu0 0.0
    %1805 = vmatpush1.msra.mxu0 0.0
    %1806 = vmatprep.subr.mxu0 0.0
    %1807 = vmatpush1.msra.mxu0 0.0
    %1808 = vmatprep.subr.mxu0 0.0
    %1809 = vmatpush1.msra.mxu0 0.0
    %1810 = vmatprep.subr.mxu0 0.0
    %1811 = vmatpush1.msra.mxu0 0.0
    %1812 = vmatprep.subr.mxu0 0.0
    %1813 = vmatpush1.msra.mxu0 0.0
    %1814 = vmatprep.subr.mxu0 0.0
    %1815 = vmatpush1.msra.mxu0 0.0
    %1816 = vmatprep.subr.mxu0 0.0
    %1817 = vmatpush1.msra.mxu0 0.0
    %1818 = vmatprep.subr.mxu0 0.0
    %1819 = vmatpush1.msra.mxu0 0.0
    %1820 = vmatprep.subr.mxu0 0.0
    %1821 = vmatpush1.msra.mxu0 0.0
    %1822 = vmatprep.mubr.f32.mxu0 0.0
    %1823 = vmatmul.mubr.f32.gmra.mrb[0].mxu0 %v1753
    %v1824 = vpop.f32.mrb[0].mxu0
    %v1825 = vadd.f32 %v1749, %v1824
    %v1826 = vpop.f32.mrb[0].mxu0
    %1827 = vmatprep.mubr.f32.mxu0 0.0
    %1828 = vmatmul.mubr.f32.gmra.mrb[0].mxu0 %v1756
    %v1829 = vpop.f32.mrb[0].mxu0
    %v1830 = vadd.f32 %v1749, %v1829
    %v1831 = vpop.f32.mrb[0].mxu0
    %1832 = vdwg.mxu0
    %v1833 = vadd.f32 %v1632, %v1825
    %v1834 = vadd.f32 %v1633, %v1830
    %v1835 = vsel %vm62, %v1833, 0.0
    %1836 = vadd.xlane.f32.xlu0 %v1835
    %v1837 = vpop.xlane.xlu0 %1836
    %v1838 = vsel %vm62, %v1834, 0.0
    %1839 = vadd.xlane.f32.xlu0 %v1838
    %v1840 = vpop.xlane.xlu0 %1839
    %v1841 = vmul.f32 %v1837, %v1595
    %v1842 = vmul.f32 %v1840, %v1595
    %v1843 = vsub.f32 %v1833, %v1841
    %v1844 = vsub.f32 %v1834, %v1842
    %v1845 = vmul.f32 %v1843, %v1843
    %v1846 = vmul.f32 %v1844, %v1844
    %v1847 = vsel %vm62, %v1845, 0.0
    %1848 = vadd.xlane.f32.xlu0 %v1847
    %v1849 = vpop.xlane.xlu0 %1848
    %v1850 = vsel %vm62, %v1846, 0.0
    %1851 = vadd.xlane.f32.xlu0 %v1850
    %v1852 = vpop.xlane.xlu0 %1851
    %v1853 = vmul.f32 %v1849, %v1595
    %v1854 = vmul.f32 %v1852, %v1595
    %v1855 = vadd.f32 %v1853, 1e-05
    %v1856 = vadd.f32 %v1854, 1e-05
    %v1857 = vrsqrt.pop %v1855
    %v1858 = vrsqrt.pop %v1856
    %v1859 = vmul.f32 %v1843, %v1857
    %v1860 = vmul.f32 %v1844, %v1858
    %v1861 = vld [vmem:[%s10] sm:$0x1]
    %v1863 = vlaneseq
    %v1864 = vshrl.u32 %v1863, 7
    %v1865 = vsub.s32 0, %v1864
    %v1866 = vrot.slane %v1861, %v1865
    %v1868 = vmul.f32 %v1859, %v1866
    %v1869 = vmul.f32 %v1860, %v1866
    %v1870 = vld [vmem:[%s11] sm:$0x1]
    %v1872 = vlaneseq
    %v1873 = vshrl.u32 %v1872, 7
    %v1874 = vsub.s32 0, %v1873
    %v1875 = vrot.slane %v1870, %v1874
    %v1877 = vadd.f32 %v1868, %v1875
    %v1878 = vadd.f32 %v1869, %v1875
    %1879 = vst.msk [vmem:[#allocation5] sm:$0xff] %vm62, %v1877
    %1880 = vst.msk [vmem:[#allocation5 + $0x8] sm:$0xff] %vm62, %v1878
    // Predicated region
    $region54: #{tpu_custom_call.1} parent=1 // pred_check
      _
    $region55: #{tpu_custom_call.1} parent=1 // pred_check_branch
      %1882 = sbr.rel (0) target = $region57
    $region56: #{tpu_custom_call.1} parent=1 // pred_region
      %s1884 = ssub.s32 256, 256
      %1885 = vsyncadd [#allocation4], %s1884
      %s1886 = sshll.u32 [#allocation5], 4
      %s1887 = int_to_ptr.vmem [resolvable:$true] %s1886
      %1892 = dma.vmem_to_hbm [thread:$0]  %s1887, 256, %s12, [#allocation4], 128, 128, 8
    $region57: #{tpu_custom_call.1} parent=1 // pred_fallthru
      _
    // Predicated region
    $region58: #{tpu_custom_call.1} parent=1 // pred_check
      _
    $region59: #{tpu_custom_call.1} parent=1 // pred_check_branch
      %1894 = sbr.rel (0) target = $region61
    $region60: #{tpu_custom_call.1} parent=1 // pred_region
      %1895 = dma.done [#allocation4], 256
    $region61: #{tpu_custom_call.1} parent=1 // pred_fallthru
      _
    %1896 = vsyncpa [#allocation3], 1
    %1897 = vsyncpa [#allocation4], 1

</llo_original>
